<compile_context>
chip_gen: v7x
topology: tpu7x:2x2x1
jax: 0.10.0
libtpu: 0.0.40
codegen_flags: <defaults>
</compile_context>

<pallas_src>
import jax
import jax.numpy as jnp
from jax.experimental import pallas as pl
from jax.experimental.pallas import tpu as pltpu


def _log_sigmoid(x):
    # numerically stable logsigmoid: single exp + single log1p (EUP friendly)
    return jnp.minimum(x, 0.0) - jnp.log1p(jnp.exp(-jnp.abs(x)))


# ---------------------------------------------------------------------------
# Kernel 0 (per batch): project desc1 once (hoisted out of the M-tile loop)
# and compute the matchability logit row z1 (lane-dense (1, N), f32).
# ---------------------------------------------------------------------------
def _prep_kernel(d1_ref, wp_ref, bp_ref, wm_ref, bm_ref, m1_ref, z1_ref):
    d1 = d1_ref[0]                     # (N, D) f32
    wp = wp_ref[...]                   # (D, D) bf16 == final_proj.weight.T * d**-0.25
    bp = bp_ref[...]                   # (1, D) f32  == final_proj.bias * d**-0.25
    wm = wm_ref[...]                   # (1, D) f32  == matchability.weight
    bm = bm_ref[...]                   # (1, 1) f32  == matchability.bias

    m1 = jnp.dot(d1.astype(jnp.bfloat16), wp,
                 preferred_element_type=jnp.float32) + bp        # (N, D) f32
    m1_ref[0] = m1.astype(jnp.bfloat16)

    # matchability logits from f32 descriptors, emitted lane-dense as (1, N)
    z1 = jax.lax.dot_general(wm, d1, (((1,), (1,)), ((), ())),
                             preferred_element_type=jnp.float32) + bm
    z1_ref[0] = z1


# ---------------------------------------------------------------------------
# Kernel 1 (per batch, per M-tile): projection of the desc0 tile, similarity
# tile (bf16 output), per-tile partial column LSE, and z0 logits.
# ---------------------------------------------------------------------------
def _sim_kernel(d0_ref, m1_ref, wp_ref, bp_ref, wm_ref, bm_ref,
                sim_ref, col_ref, z0_ref):
    d0 = d0_ref[0]                     # (tm, D) f32
    m1 = m1_ref[0]                     # (N, D)  bf16
    wp = wp_ref[...]
    bp = bp_ref[...]
    wm = wm_ref[...]
    bm = bm_ref[...]

    m0 = jnp.dot(d0.astype(jnp.bfloat16), wp,
                 preferred_element_type=jnp.float32) + bp        # (tm, D) f32
    # canonical A @ B.T MXU pattern (contract the feature dim of both)
    sim = jax.lax.dot_general(m0.astype(jnp.bfloat16), m1,
                              (((1,), (1,)), ((), ())),
                              preferred_element_type=jnp.float32)  # (tm, N) f32

    sim_ref[0] = sim.astype(jnp.bfloat16)

    # partial column logsumexp for this M-tile (combined across tiles in XLA)
    cmax = jnp.max(sim, axis=0, keepdims=True)                    # (1, N)
    col_ref[0] = cmax + jnp.log(
        jnp.sum(jnp.exp(sim - cmax), axis=0, keepdims=True))

    # matchability logits from f32 descriptors (VPU mul + lane reduce)
    z0_ref[0] = jnp.sum(d0 * wm, axis=-1, keepdims=True) + bm     # (tm, 1)


# ---------------------------------------------------------------------------
# Kernel 2 (per batch, per M-tile): fused double-log-softmax + certainties.
#   inner = 2*sim - lse_row - lse_col + logsigmoid(z0) + logsigmoid(z1)
# ---------------------------------------------------------------------------
def _scores_kernel(sim_ref, lsec_ref, z0_ref, lsz1_ref, inner_ref):
    sim = sim_ref[0].astype(jnp.float32)      # (tm, N)
    lse_c = lsec_ref[0]                       # (1, N)  column LSE (over all M)
    z0 = z0_ref[0]                            # (tm, 1)
    lsz1 = lsz1_ref[0]                        # (1, N)  logsigmoid(z1)

    rmax = jnp.max(sim, axis=-1, keepdims=True)
    lse_r = rmax + jnp.log(jnp.sum(jnp.exp(sim - rmax), axis=-1, keepdims=True))

    cert = _log_sigmoid(z0) + lsz1                                 # (tm, N)
    inner_ref[0] = 2.0 * sim - lse_r - lse_c + cert


def _choose_tile(m):
    # v7x (64 MiB VMEM): ~256 at N~2K keeps per-step buffering in budget;
    # v6e/v5e (128 MiB): 512-1024 is better (fewer grid steps, full DMA hide).
    for cand in (256, 128, 64, 32, 16, 8):
        if m % cand == 0:
            return cand
    return m


@jax.jit
def match_assignment(desc0, desc1, w_proj, b_proj, w_match, b_match):
    """desc0: (B, M, D), desc1: (B, N, D), f32.
    w_proj: (D, D) PyTorch Linear weight, b_proj: (D,)
    w_match: (1, D) PyTorch Linear weight, b_match: (1,)
    Returns (scores (B, M+1, N+1) f32, sim (B, M, N) bf16)."""
    b, m, dch = desc0.shape
    _, n, _ = desc1.shape
    scale = 1.0 / float(dch) ** 0.25

    # Fold the d**-0.25 scale into the constant projection params.
    wp_t = (jnp.asarray(w_proj, jnp.float32).T * scale).astype(jnp.bfloat16)
    bp = (jnp.asarray(b_proj, jnp.float32) * scale).reshape(1, dch)
    wm = jnp.asarray(w_match, jnp.float32).reshape(1, dch)
    bm = jnp.asarray(b_match, jnp.float32).reshape(1, 1)

    d0 = jnp.asarray(desc0, jnp.float32)      # no bf16 copies through HBM
    d1 = jnp.asarray(desc1, jnp.float32)

    tm = _choose_tile(m)
    mt = m // tm

    vmem_limit = 48 * 1024 * 1024   # v7x-safe; v6e/v5e could raise to ~100 MiB
    cp1 = pltpu.CompilerParams(dimension_semantics=("parallel",),
                               vmem_limit_bytes=vmem_limit)
    cp2 = pltpu.CompilerParams(dimension_semantics=("parallel", "parallel"),
                               vmem_limit_bytes=vmem_limit)

    # --- per-batch prep: projected desc1 (bf16) and z1 row ------------------
    m1, z1row = pl.pallas_call(
        _prep_kernel,
        out_shape=(jax.ShapeDtypeStruct((b, n, dch), jnp.bfloat16),
                   jax.ShapeDtypeStruct((b, 1, n), jnp.float32)),
        grid=(b,),
        in_specs=[pl.BlockSpec((1, n, dch), lambda i: (i, 0, 0)),
                  pl.BlockSpec((dch, dch), lambda i: (0, 0)),
                  pl.BlockSpec((1, dch), lambda i: (0, 0)),
                  pl.BlockSpec((1, dch), lambda i: (0, 0)),
                  pl.BlockSpec((1, 1), lambda i: (0, 0))],
        out_specs=(pl.BlockSpec((1, n, dch), lambda i: (i, 0, 0)),
                   pl.BlockSpec((1, 1, n), lambda i: (i, 0, 0))),
        compiler_params=cp1,
    )(d1, wp_t, bp, wm, bm)

    # --- M-tiled similarity + partial column LSE + z0 -----------------------
    sim, col_part, z0 = pl.pallas_call(
        _sim_kernel,
        out_shape=(jax.ShapeDtypeStruct((b, m, n), jnp.bfloat16),
                   jax.ShapeDtypeStruct((b, mt, n), jnp.float32),
                   jax.ShapeDtypeStruct((b, m, 1), jnp.float32)),
        grid=(b, mt),
        in_specs=[pl.BlockSpec((1, tm, dch), lambda i, j: (i, j, 0)),
                  pl.BlockSpec((1, n, dch), lambda i, j: (i, 0, 0)),
                  pl.BlockSpec((dch, dch), lambda i, j: (0, 0)),
                  pl.BlockSpec((1, dch), lambda i, j: (0, 0)),
                  pl.BlockSpec((1, dch), lambda i, j: (0, 0)),
                  pl.BlockSpec((1, 1), lambda i, j: (0, 0))],
        out_specs=(pl.BlockSpec((1, tm, n), lambda i, j: (i, j, 0)),
                   pl.BlockSpec((1, 1, n), lambda i, j: (i, j, 0)),
                   pl.BlockSpec((1, tm, 1), lambda i, j: (i, j, 0))),
        compiler_params=cp2,
    )(d0, m1, wp_t, bp, wm, bm)

    # --- combine partial column LSEs across M-tiles (tiny, exact) -----------
    cmax = jnp.max(col_part, axis=1)                               # (B, N)
    lse_c = cmax + jnp.log(
        jnp.sum(jnp.exp(col_part - cmax[:, None, :]), axis=1))     # (B, N)
    lse_c = lse_c[:, None, :]                                      # (B, 1, N)
    lsz1 = jax.nn.log_sigmoid(z1row)                               # (B, 1, N)

    # --- M-tiled fused scores block ------------------------------------------
    inner = pl.pallas_call(
        _scores_kernel,
        out_shape=jax.ShapeDtypeStruct((b, m, n), jnp.float32),
        grid=(b, mt),
        in_specs=[pl.BlockSpec((1, tm, n), lambda i, j: (i, j, 0)),
                  pl.BlockSpec((1, 1, n), lambda i, j: (i, 0, 0)),
                  pl.BlockSpec((1, tm, 1), lambda i, j: (i, j, 0)),
                  pl.BlockSpec((1, 1, n), lambda i, j: (i, 0, 0))],
        out_specs=pl.BlockSpec((1, tm, n), lambda i, j: (i, j, 0)),
        compiler_params=cp2,
    )(sim, lse_c, z0, lsz1)

    # --- assemble the bordered (M+1, N+1) log-assignment matrix in XLA ------
    ls = jax.nn.log_sigmoid
    last_col = ls(-z0)                                    # (B, M, 1)
    last_row = ls(-z1row)                                 # (B, 1, N)
    corner = jnp.zeros((b, 1, 1), jnp.float32)
    top = jnp.concatenate([inner, last_col], axis=2)      # (B, M, N+1)
    bottom = jnp.concatenate([last_row, corner], axis=2)  # (B, 1, N+1)
    scores = jnp.concatenate([top, bottom], axis=1)       # (B, M+1, N+1)
    return scores, sim


def _reference(desc0, desc1, w_proj, b_proj, w_match, b_match):
    """Pure-JAX (f32) reproduction of the PyTorch forward, for verification."""
    m0 = desc0 @ w_proj.T + b_proj
    m1 = desc1 @ w_proj.T + b_proj
    d = m0.shape[-1]
    m0 = m0 / d ** 0.25
    m1 = m1 / d ** 0.25
    sim = jnp.einsum('bmd,bnd->bmn', m0, m1)
    z0 = desc0 @ w_match.T + b_match      # (B, M, 1)
    z1 = desc1 @ w_match.T + b_match      # (B, N, 1)
    ls = jax.nn.log_sigmoid
    certainties = ls(z0) + jnp.swapaxes(ls(z1), 1, 2)
    scores0 = jax.nn.log_softmax(sim, axis=2)
    scores1 = jax.nn.log_softmax(sim, axis=1)
    b_, m_, n_ = sim.shape
    scores = jnp.zeros((b_, m_ + 1, n_ + 1), jnp.float32)
    scores = scores.at[:, :m_, :n_].set(scores0 + scores1 + certainties)
    scores = scores.at[:, :-1, -1].set(ls(-z0[..., 0]))
    scores = scores.at[:, -1, :-1].set(ls(-z1[..., 0]))
    return scores, sim


if __name__ == "__main__":
    # NOTE: tiny demo shapes; at this size XLA fusion would beat the kernel
    # (masked 8-lane stores, ~12-25% MXU K-utilization) -- the kernel is sized
    # for production M=N~2K, D=256.
    B, M, N, D = 2, 16, 8, 32

    key = jax.random.PRNGKey(0)
    k0, k1, k2, k3, k4, k5 = jax.random.split(key, 6)
    desc0 = jax.random.normal(k0, (B, M, D), jnp.float32)
    desc1 = jax.random.normal(k1, (B, N, D), jnp.float32)
    # deterministic synthetic parameters (shapes from nn.Linear in __init__)
    w_proj = jax.random.normal(k2, (D, D), jnp.float32) * (1.0 / D ** 0.5)
    b_proj = jax.random.normal(k3, (D,), jnp.float32) * 0.1
    w_match = jax.random.normal(k4, (1, D), jnp.float32) * (1.0 / D ** 0.5)
    b_match = jax.random.normal(k5, (1,), jnp.float32) * 0.1

    scores, sim = match_assignment(desc0, desc1, w_proj, b_proj, w_match, b_match)
    jax.block_until_ready((scores, sim))

    ref_scores, ref_sim = _reference(desc0, desc1, w_proj, b_proj, w_match, b_match)
    assert scores.shape == (B, M + 1, N + 1) and sim.shape == (B, M, N)
    # Tolerances relaxed for bf16 MXU matmuls + bf16 sim storage (f32 reference).
    assert jnp.allclose(sim, ref_sim, atol=5e-2, rtol=5e-2)
    assert jnp.allclose(scores, ref_scores, atol=1e-1, rtol=5e-2)

    print("KERNEL_OK")
</pallas_src>

<mosaic_0001>
module attributes {stable_mosaic.version = 11 : i64} {
  func.func @_prep_kernel(%arg0: i32, %arg1: memref<1x8x32xf32, #tpu.memory_space<vmem>>, %arg2: memref<32x32xbf16, #tpu.memory_space<vmem>>, %arg3: memref<1x32xf32, #tpu.memory_space<vmem>>, %arg4: memref<1x32xf32, #tpu.memory_space<vmem>>, %arg5: memref<1x1xf32, #tpu.memory_space<vmem>>, %arg6: memref<1x8x32xbf16, #tpu.memory_space<vmem>>, %arg7: memref<1x1x8xf32, #tpu.memory_space<vmem>>) attributes {dimension_semantics = [#tpu.dimension_semantics<parallel>], iteration_bounds = array<i64: 2>, scalar_prefetch = 0 : i64, scratch_operands = 0 : i64, tpu.core_type = #tpu.core_type<tc>, window_params = [{transform_indices = @transform_0, window_bounds = array<i64: 1, 8, 32>}, {pipeline_mode = #tpu.pipeline_mode<synchronous>, transform_indices = @transform_1, window_bounds = array<i64: 32, 32>}, {pipeline_mode = #tpu.pipeline_mode<synchronous>, transform_indices = @transform_2, window_bounds = array<i64: 1, 32>}, {pipeline_mode = #tpu.pipeline_mode<synchronous>, transform_indices = @transform_3, window_bounds = array<i64: 1, 32>}, {pipeline_mode = #tpu.pipeline_mode<synchronous>, transform_indices = @transform_4, window_bounds = array<i64: 1, 1>}, {transform_indices = @transform_5, window_bounds = array<i64: 1, 8, 32>}, {transform_indices = @transform_6, window_bounds = array<i64: 1, 1, 8>}]} {
    %c0 = arith.constant 0 : index
    %c0_0 = arith.constant 0 : index
    %c0_1 = arith.constant 0 : index
    %0 = vector.load %arg1[%c0, %c0_0, %c0_1] : memref<1x8x32xf32, #tpu.memory_space<vmem>>, vector<1x8x32xf32>
    %1 = vector.shape_cast %0 : vector<1x8x32xf32> to vector<8x32xf32>
    %c0_2 = arith.constant 0 : index
    %c0_3 = arith.constant 0 : index
    %2 = vector.load %arg2[%c0_2, %c0_3] : memref<32x32xbf16, #tpu.memory_space<vmem>>, vector<32x32xbf16>
    %c0_4 = arith.constant 0 : index
    %c0_5 = arith.constant 0 : index
    %3 = vector.load %arg3[%c0_4, %c0_5] : memref<1x32xf32, #tpu.memory_space<vmem>>, vector<1x32xf32>
    %c0_6 = arith.constant 0 : index
    %c0_7 = arith.constant 0 : index
    %4 = vector.load %arg4[%c0_6, %c0_7] : memref<1x32xf32, #tpu.memory_space<vmem>>, vector<1x32xf32>
    %c0_8 = arith.constant 0 : index
    %c0_9 = arith.constant 0 : index
    %5 = vector.load %arg5[%c0_8, %c0_9] : memref<1x1xf32, #tpu.memory_space<vmem>>, vector<1x1xf32>
    %6 = arith.truncf %1 : vector<8x32xf32> to vector<8x32xbf16>
    %cst = arith.constant dense<0.000000e+00> : vector<8x32xf32>
    %7 = tpu.matmul %6, %2, %cst {dimension_numbers = #tpu.dot_dimension_numbers<[1], [0], [0], [1], [0, 0, 1, 1], [], []>} : vector<8x32xbf16>, vector<32x32xbf16>, vector<8x32xf32> -> vector<8x32xf32>
    %8 = vector.broadcast %3 : vector<1x32xf32> to vector<8x32xf32>
    %9 = arith.addf %7, %8 : vector<8x32xf32>
    %10 = arith.truncf %9 : vector<8x32xf32> to vector<8x32xbf16>
    %c0_10 = arith.constant 0 : index
    %c0_11 = arith.constant 0 : index
    %c0_12 = arith.constant 0 : index
    %11 = vector.load %arg6[%c0_10, %c0_11, %c0_12] : memref<1x8x32xbf16, #tpu.memory_space<vmem>>, vector<1x8x32xbf16>
    %12 = vector.shape_cast %11 : vector<1x8x32xbf16> to vector<8x32xbf16>
    %13 = vector.shape_cast %10 : vector<8x32xbf16> to vector<1x8x32xbf16>
    tpu.vector_store %arg6[%c0_10, %c0_11, %c0_12], %13 {strides = array<i32>} : memref<1x8x32xbf16, #tpu.memory_space<vmem>>, vector<1x8x32xbf16>,
    %cst_13 = arith.constant dense<0.000000e+00> : vector<1x8xf32>
    %14 = tpu.matmul %4, %1, %cst_13 {dimension_numbers = #tpu.dot_dimension_numbers<[1], [1], [0], [0], [0, 0, 1, 0], [], []>} : vector<1x32xf32>, vector<8x32xf32>, vector<1x8xf32> -> vector<1x8xf32>
    %15 = vector.broadcast %5 : vector<1x1xf32> to vector<1x8xf32>
    %16 = arith.addf %14, %15 : vector<1x8xf32>
    %c0_14 = arith.constant 0 : index
    %c0_15 = arith.constant 0 : index
    %c0_16 = arith.constant 0 : index
    %17 = vector.load %arg7[%c0_14, %c0_15, %c0_16] : memref<1x1x8xf32, #tpu.memory_space<vmem>>, vector<1x1x8xf32>
    %18 = vector.shape_cast %17 : vector<1x1x8xf32> to vector<1x8xf32>
    %19 = vector.shape_cast %16 : vector<1x8xf32> to vector<1x1x8xf32>
    tpu.vector_store %arg7[%c0_14, %c0_15, %c0_16], %19 {strides = array<i32>} : memref<1x1x8xf32, #tpu.memory_space<vmem>>, vector<1x1x8xf32>,
    return
  }
  func.func @transform_0(%arg0: i32) -> (i32, i32, i32) {
    %c0_i32 = arith.constant 0 : i32
    %c0_i32_0 = arith.constant 0 : i32
    %c0_i32_1 = arith.constant 0 : i32
    return %arg0, %c0_i32, %c0_i32_0 : i32, i32, i32
  }
  func.func @transform_1(%arg0: i32) -> (i32, i32) {
    %c0_i32 = arith.constant 0 : i32
    %c0_i32_0 = arith.constant 0 : i32
    %c0_i32_1 = arith.constant 0 : i32
    return %c0_i32, %c0_i32_0 : i32, i32
  }
  func.func @transform_2(%arg0: i32) -> (i32, i32) {
    %c0_i32 = arith.constant 0 : i32
    %c0_i32_0 = arith.constant 0 : i32
    %c0_i32_1 = arith.constant 0 : i32
    return %c0_i32, %c0_i32_0 : i32, i32
  }
  func.func @transform_3(%arg0: i32) -> (i32, i32) {
    %c0_i32 = arith.constant 0 : i32
    %c0_i32_0 = arith.constant 0 : i32
    %c0_i32_1 = arith.constant 0 : i32
    return %c0_i32, %c0_i32_0 : i32, i32
  }
  func.func @transform_4(%arg0: i32) -> (i32, i32) {
    %c0_i32 = arith.constant 0 : i32
    %c0_i32_0 = arith.constant 0 : i32
    %c0_i32_1 = arith.constant 0 : i32
    return %c0_i32, %c0_i32_0 : i32, i32
  }
  func.func @transform_5(%arg0: i32) -> (i32, i32, i32) {
    %c0_i32 = arith.constant 0 : i32
    %c0_i32_0 = arith.constant 0 : i32
    %c0_i32_1 = arith.constant 0 : i32
    return %arg0, %c0_i32, %c0_i32_0 : i32, i32, i32
  }
  func.func @transform_6(%arg0: i32) -> (i32, i32, i32) {
    %c0_i32 = arith.constant 0 : i32
    %c0_i32_0 = arith.constant 0 : i32
    %c0_i32_1 = arith.constant 0 : i32
    return %arg0, %c0_i32, %c0_i32_0 : i32, i32, i32
  }
}

module attributes {stable_mosaic.version = 11 : i64} {
  func.func @_sim_kernel(%arg0: i32, %arg1: i32, %arg2: memref<1x16x32xf32, #tpu.memory_space<vmem>>, %arg3: memref<1x8x32xbf16, #tpu.memory_space<vmem>>, %arg4: memref<32x32xbf16, #tpu.memory_space<vmem>>, %arg5: memref<1x32xf32, #tpu.memory_space<vmem>>, %arg6: memref<1x32xf32, #tpu.memory_space<vmem>>, %arg7: memref<1x1xf32, #tpu.memory_space<vmem>>, %arg8: memref<1x16x8xbf16, #tpu.memory_space<vmem>>, %arg9: memref<1x1x8xf32, #tpu.memory_space<vmem>>, %arg10: memref<1x16x1xf32, #tpu.memory_space<vmem>>) attributes {dimension_semantics = [#tpu.dimension_semantics<parallel>, #tpu.dimension_semantics<parallel>], iteration_bounds = array<i64: 2, 1>, scalar_prefetch = 0 : i64, scratch_operands = 0 : i64, tpu.core_type = #tpu.core_type<tc>, window_params = [{transform_indices = @transform_0, window_bounds = array<i64: 1, 16, 32>}, {transform_indices = @transform_1, window_bounds = array<i64: 1, 8, 32>}, {pipeline_mode = #tpu.pipeline_mode<synchronous>, transform_indices = @transform_2, window_bounds = array<i64: 32, 32>}, {pipeline_mode = #tpu.pipeline_mode<synchronous>, transform_indices = @transform_3, window_bounds = array<i64: 1, 32>}, {pipeline_mode = #tpu.pipeline_mode<synchronous>, transform_indices = @transform_4, window_bounds = array<i64: 1, 32>}, {pipeline_mode = #tpu.pipeline_mode<synchronous>, transform_indices = @transform_5, window_bounds = array<i64: 1, 1>}, {transform_indices = @transform_6, window_bounds = array<i64: 1, 16, 8>}, {transform_indices = @transform_7, window_bounds = array<i64: 1, 1, 8>}, {transform_indices = @transform_8, window_bounds = array<i64: 1, 16, 1>}]} {
    %c0 = arith.constant 0 : index
    %c0_0 = arith.constant 0 : index
    %c0_1 = arith.constant 0 : index
    %0 = vector.load %arg2[%c0, %c0_0, %c0_1] : memref<1x16x32xf32, #tpu.memory_space<vmem>>, vector<1x16x32xf32>
    %1 = vector.shape_cast %0 : vector<1x16x32xf32> to vector<16x32xf32>
    %c0_2 = arith.constant 0 : index
    %c0_3 = arith.constant 0 : index
    %c0_4 = arith.constant 0 : index
    %2 = vector.load %arg3[%c0_2, %c0_3, %c0_4] : memref<1x8x32xbf16, #tpu.memory_space<vmem>>, vector<1x8x32xbf16>
    %3 = vector.shape_cast %2 : vector<1x8x32xbf16> to vector<8x32xbf16>
    %c0_5 = arith.constant 0 : index
    %c0_6 = arith.constant 0 : index
    %4 = vector.load %arg4[%c0_5, %c0_6] : memref<32x32xbf16, #tpu.memory_space<vmem>>, vector<32x32xbf16>
    %c0_7 = arith.constant 0 : index
    %c0_8 = arith.constant 0 : index
    %5 = vector.load %arg5[%c0_7, %c0_8] : memref<1x32xf32, #tpu.memory_space<vmem>>, vector<1x32xf32>
    %c0_9 = arith.constant 0 : index
    %c0_10 = arith.constant 0 : index
    %6 = vector.load %arg6[%c0_9, %c0_10] : memref<1x32xf32, #tpu.memory_space<vmem>>, vector<1x32xf32>
    %c0_11 = arith.constant 0 : index
    %c0_12 = arith.constant 0 : index
    %7 = vector.load %arg7[%c0_11, %c0_12] : memref<1x1xf32, #tpu.memory_space<vmem>>, vector<1x1xf32>
    %8 = arith.truncf %1 : vector<16x32xf32> to vector<16x32xbf16>
    %cst = arith.constant dense<0.000000e+00> : vector<16x32xf32>
    %9 = tpu.matmul %8, %4, %cst {dimension_numbers = #tpu.dot_dimension_numbers<[1], [0], [0], [1], [0, 0, 1, 1], [], []>} : vector<16x32xbf16>, vector<32x32xbf16>, vector<16x32xf32> -> vector<16x32xf32>
    %10 = vector.broadcast %5 : vector<1x32xf32> to vector<16x32xf32>
    %11 = arith.addf %9, %10 : vector<16x32xf32>
    %12 = arith.truncf %11 : vector<16x32xf32> to vector<16x32xbf16>
    %cst_13 = arith.constant dense<0.000000e+00> : vector<16x8xf32>
    %13 = tpu.matmul %12, %3, %cst_13 {dimension_numbers = #tpu.dot_dimension_numbers<[1], [1], [0], [0], [0, 0, 1, 0], [], []>} : vector<16x32xbf16>, vector<8x32xbf16>, vector<16x8xf32> -> vector<16x8xf32>
    %14 = arith.truncf %13 : vector<16x8xf32> to vector<16x8xbf16>
    %c0_14 = arith.constant 0 : index
    %c0_15 = arith.constant 0 : index
    %c0_16 = arith.constant 0 : index
    %15 = vector.load %arg8[%c0_14, %c0_15, %c0_16] : memref<1x16x8xbf16, #tpu.memory_space<vmem>>, vector<1x16x8xbf16>
    %16 = vector.shape_cast %15 : vector<1x16x8xbf16> to vector<16x8xbf16>
    %17 = vector.shape_cast %14 : vector<16x8xbf16> to vector<1x16x8xbf16>
    tpu.vector_store %arg8[%c0_14, %c0_15, %c0_16], %17 {strides = array<i32>} : memref<1x16x8xbf16, #tpu.memory_space<vmem>>, vector<1x16x8xbf16>,
    %cst_17 = arith.constant dense<0xFF800000> : vector<8xf32>
    %18 = vector.multi_reduction <maximumf>, %13, %cst_17 [0] : vector<16x8xf32> to vector<8xf32>
    %19 = vector.shape_cast %18 : vector<8xf32> to vector<1x8xf32>
    %20 = vector.broadcast %19 : vector<1x8xf32> to vector<16x8xf32>
    %21 = arith.subf %13, %20 : vector<16x8xf32>
    %22 = math.exp %21 : vector<16x8xf32>
    %cst_18 = arith.constant dense<0.000000e+00> : vector<8xf32>
    %23 = vector.multi_reduction <add>, %22, %cst_18 [0] : vector<16x8xf32> to vector<8xf32>
    %24 = vector.shape_cast %23 : vector<8xf32> to vector<1x8xf32>
    %25 = math.log %24 : vector<1x8xf32>
    %26 = arith.addf %19, %25 : vector<1x8xf32>
    %c0_19 = arith.constant 0 : index
    %c0_20 = arith.constant 0 : index
    %c0_21 = arith.constant 0 : index
    %27 = vector.load %arg9[%c0_19, %c0_20, %c0_21] : memref<1x1x8xf32, #tpu.memory_space<vmem>>, vector<1x1x8xf32>
    %28 = vector.shape_cast %27 : vector<1x1x8xf32> to vector<1x8xf32>
    %29 = vector.shape_cast %26 : vector<1x8xf32> to vector<1x1x8xf32>
    tpu.vector_store %arg9[%c0_19, %c0_20, %c0_21], %29 {strides = array<i32>} : memref<1x1x8xf32, #tpu.memory_space<vmem>>, vector<1x1x8xf32>,
    %30 = vector.broadcast %6 : vector<1x32xf32> to vector<16x32xf32>
    %31 = arith.mulf %1, %30 : vector<16x32xf32>
    %cst_22 = arith.constant dense<0.000000e+00> : vector<16xf32>
    %32 = vector.multi_reduction <add>, %31, %cst_22 [1] : vector<16x32xf32> to vector<16xf32>
    %33 = vector.shape_cast %32 : vector<16xf32> to vector<16x1xf32>
    %34 = vector.broadcast %7 : vector<1x1xf32> to vector<16x1xf32>
    %35 = arith.addf %33, %34 : vector<16x1xf32>
    %c0_23 = arith.constant 0 : index
    %c0_24 = arith.constant 0 : index
    %c0_25 = arith.constant 0 : index
    %36 = vector.load %arg10[%c0_23, %c0_24, %c0_25] : memref<1x16x1xf32, #tpu.memory_space<vmem>>, vector<1x16x1xf32>
    %37 = vector.shape_cast %36 : vector<1x16x1xf32> to vector<16x1xf32>
    %38 = vector.shape_cast %35 : vector<16x1xf32> to vector<1x16x1xf32>
    tpu.vector_store %arg10[%c0_23, %c0_24, %c0_25], %38 {strides = array<i32>} : memref<1x16x1xf32, #tpu.memory_space<vmem>>, vector<1x16x1xf32>,
    return
  }
  func.func @transform_0(%arg0: i32, %arg1: i32) -> (i32, i32, i32) {
    %c0_i32 = arith.constant 0 : i32
    %c0_i32_0 = arith.constant 0 : i32
    return %arg0, %arg1, %c0_i32 : i32, i32, i32
  }
  func.func @transform_1(%arg0: i32, %arg1: i32) -> (i32, i32, i32) {
    %c0_i32 = arith.constant 0 : i32
    %c0_i32_0 = arith.constant 0 : i32
    %c0_i32_1 = arith.constant 0 : i32
    return %arg0, %c0_i32, %c0_i32_0 : i32, i32, i32
  }
  func.func @transform_2(%arg0: i32, %arg1: i32) -> (i32, i32) {
    %c0_i32 = arith.constant 0 : i32
    %c0_i32_0 = arith.constant 0 : i32
    %c0_i32_1 = arith.constant 0 : i32
    return %c0_i32, %c0_i32_0 : i32, i32
  }
  func.func @transform_3(%arg0: i32, %arg1: i32) -> (i32, i32) {
    %c0_i32 = arith.constant 0 : i32
    %c0_i32_0 = arith.constant 0 : i32
    %c0_i32_1 = arith.constant 0 : i32
    return %c0_i32, %c0_i32_0 : i32, i32
  }
  func.func @transform_4(%arg0: i32, %arg1: i32) -> (i32, i32) {
    %c0_i32 = arith.constant 0 : i32
    %c0_i32_0 = arith.constant 0 : i32
    %c0_i32_1 = arith.constant 0 : i32
    return %c0_i32, %c0_i32_0 : i32, i32
  }
  func.func @transform_5(%arg0: i32, %arg1: i32) -> (i32, i32) {
    %c0_i32 = arith.constant 0 : i32
    %c0_i32_0 = arith.constant 0 : i32
    %c0_i32_1 = arith.constant 0 : i32
    return %c0_i32, %c0_i32_0 : i32, i32
  }
  func.func @transform_6(%arg0: i32, %arg1: i32) -> (i32, i32, i32) {
    %c0_i32 = arith.constant 0 : i32
    %c0_i32_0 = arith.constant 0 : i32
    return %arg0, %arg1, %c0_i32 : i32, i32, i32
  }
  func.func @transform_7(%arg0: i32, %arg1: i32) -> (i32, i32, i32) {
    %c0_i32 = arith.constant 0 : i32
    %c0_i32_0 = arith.constant 0 : i32
    return %arg0, %arg1, %c0_i32 : i32, i32, i32
  }
  func.func @transform_8(%arg0: i32, %arg1: i32) -> (i32, i32, i32) {
    %c0_i32 = arith.constant 0 : i32
    %c0_i32_0 = arith.constant 0 : i32
    return %arg0, %arg1, %c0_i32 : i32, i32, i32
  }
}

module attributes {stable_mosaic.version = 11 : i64} {
  func.func @_scores_kernel(%arg0: i32, %arg1: i32, %arg2: memref<1x16x8xbf16, #tpu.memory_space<vmem>>, %arg3: memref<1x1x8xf32, #tpu.memory_space<vmem>>, %arg4: memref<1x16x1xf32, #tpu.memory_space<vmem>>, %arg5: memref<1x1x8xf32, #tpu.memory_space<vmem>>, %arg6: memref<1x16x8xf32, #tpu.memory_space<vmem>>) attributes {dimension_semantics = [#tpu.dimension_semantics<parallel>, #tpu.dimension_semantics<parallel>], iteration_bounds = array<i64: 2, 1>, scalar_prefetch = 0 : i64, scratch_operands = 0 : i64, tpu.core_type = #tpu.core_type<tc>, window_params = [{transform_indices = @transform_0, window_bounds = array<i64: 1, 16, 8>}, {transform_indices = @transform_1, window_bounds = array<i64: 1, 1, 8>}, {transform_indices = @transform_2, window_bounds = array<i64: 1, 16, 1>}, {transform_indices = @transform_3, window_bounds = array<i64: 1, 1, 8>}, {transform_indices = @transform_4, window_bounds = array<i64: 1, 16, 8>}]} {
    %c0 = arith.constant 0 : index
    %c0_0 = arith.constant 0 : index
    %c0_1 = arith.constant 0 : index
    %0 = vector.load %arg2[%c0, %c0_0, %c0_1] : memref<1x16x8xbf16, #tpu.memory_space<vmem>>, vector<1x16x8xbf16>
    %1 = vector.shape_cast %0 : vector<1x16x8xbf16> to vector<16x8xbf16>
    %2 = arith.extf %1 : vector<16x8xbf16> to vector<16x8xf32>
    %c0_2 = arith.constant 0 : index
    %c0_3 = arith.constant 0 : index
    %c0_4 = arith.constant 0 : index
    %3 = vector.load %arg3[%c0_2, %c0_3, %c0_4] : memref<1x1x8xf32, #tpu.memory_space<vmem>>, vector<1x1x8xf32>
    %4 = vector.shape_cast %3 : vector<1x1x8xf32> to vector<1x8xf32>
    %c0_5 = arith.constant 0 : index
    %c0_6 = arith.constant 0 : index
    %c0_7 = arith.constant 0 : index
    %5 = vector.load %arg4[%c0_5, %c0_6, %c0_7] : memref<1x16x1xf32, #tpu.memory_space<vmem>>, vector<1x16x1xf32>
    %6 = vector.shape_cast %5 : vector<1x16x1xf32> to vector<16x1xf32>
    %c0_8 = arith.constant 0 : index
    %c0_9 = arith.constant 0 : index
    %c0_10 = arith.constant 0 : index
    %7 = vector.load %arg5[%c0_8, %c0_9, %c0_10] : memref<1x1x8xf32, #tpu.memory_space<vmem>>, vector<1x1x8xf32>
    %8 = vector.shape_cast %7 : vector<1x1x8xf32> to vector<1x8xf32>
    %cst = arith.constant dense<0xFF800000> : vector<16xf32>
    %9 = vector.multi_reduction <maximumf>, %2, %cst [1] : vector<16x8xf32> to vector<16xf32>
    %10 = vector.shape_cast %9 : vector<16xf32> to vector<16x1xf32>
    %11 = vector.broadcast %10 : vector<16x1xf32> to vector<16x8xf32>
    %12 = arith.subf %2, %11 : vector<16x8xf32>
    %13 = math.exp %12 : vector<16x8xf32>
    %cst_11 = arith.constant dense<0.000000e+00> : vector<16xf32>
    %14 = vector.multi_reduction <add>, %13, %cst_11 [1] : vector<16x8xf32> to vector<16xf32>
    %15 = vector.shape_cast %14 : vector<16xf32> to vector<16x1xf32>
    %16 = math.log %15 : vector<16x1xf32>
    %17 = arith.addf %10, %16 : vector<16x1xf32>
    %cst_12 = arith.constant 0.000000e+00 : f32
    %18 = vector.broadcast %cst_12 : f32 to vector<16x1xf32>
    %19 = arith.minimumf %6, %18 : vector<16x1xf32>
    %20 = math.absf %6 : vector<16x1xf32>
    %cst_13 = arith.constant 0.000000e+00 : f32
    %21 = vector.broadcast %cst_13 : f32 to vector<16x1xf32>
    %22 = arith.subf %21, %20 : vector<16x1xf32>
    %23 = math.exp %22 : vector<16x1xf32>
    %24 = math.log1p %23 : vector<16x1xf32>
    %25 = arith.subf %19, %24 : vector<16x1xf32>
    %26 = vector.broadcast %25 : vector<16x1xf32> to vector<16x8xf32>
    %27 = vector.broadcast %8 : vector<1x8xf32> to vector<16x8xf32>
    %28 = arith.addf %26, %27 : vector<16x8xf32>
    %cst_14 = arith.constant 2.000000e+00 : f32
    %29 = vector.broadcast %cst_14 : f32 to vector<16x8xf32>
    %30 = arith.mulf %29, %2 : vector<16x8xf32>
    %31 = vector.broadcast %17 : vector<16x1xf32> to vector<16x8xf32>
    %32 = arith.subf %30, %31 : vector<16x8xf32>
    %33 = vector.broadcast %4 : vector<1x8xf32> to vector<16x8xf32>
    %34 = arith.subf %32, %33 : vector<16x8xf32>
    %35 = arith.addf %34, %28 : vector<16x8xf32>
    %c0_15 = arith.constant 0 : index
    %c0_16 = arith.constant 0 : index
    %c0_17 = arith.constant 0 : index
    %36 = vector.load %arg6[%c0_15, %c0_16, %c0_17] : memref<1x16x8xf32, #tpu.memory_space<vmem>>, vector<1x16x8xf32>
    %37 = vector.shape_cast %36 : vector<1x16x8xf32> to vector<16x8xf32>
    %38 = vector.shape_cast %35 : vector<16x8xf32> to vector<1x16x8xf32>
    tpu.vector_store %arg6[%c0_15, %c0_16, %c0_17], %38 {strides = array<i32>} : memref<1x16x8xf32, #tpu.memory_space<vmem>>, vector<1x16x8xf32>,
    return
  }
  func.func @transform_0(%arg0: i32, %arg1: i32) -> (i32, i32, i32) {
    %c0_i32 = arith.constant 0 : i32
    %c0_i32_0 = arith.constant 0 : i32
    return %arg0, %arg1, %c0_i32 : i32, i32, i32
  }
  func.func @transform_1(%arg0: i32, %arg1: i32) -> (i32, i32, i32) {
    %c0_i32 = arith.constant 0 : i32
    %c0_i32_0 = arith.constant 0 : i32
    %c0_i32_1 = arith.constant 0 : i32
    return %arg0, %c0_i32, %c0_i32_0 : i32, i32, i32
  }
  func.func @transform_2(%arg0: i32, %arg1: i32) -> (i32, i32, i32) {
    %c0_i32 = arith.constant 0 : i32
    %c0_i32_0 = arith.constant 0 : i32
    return %arg0, %arg1, %c0_i32 : i32, i32, i32
  }
  func.func @transform_3(%arg0: i32, %arg1: i32) -> (i32, i32, i32) {
    %c0_i32 = arith.constant 0 : i32
    %c0_i32_0 = arith.constant 0 : i32
    %c0_i32_1 = arith.constant 0 : i32
    return %arg0, %c0_i32, %c0_i32_0 : i32, i32, i32
  }
  func.func @transform_4(%arg0: i32, %arg1: i32) -> (i32, i32, i32) {
    %c0_i32 = arith.constant 0 : i32
    %c0_i32_0 = arith.constant 0 : i32
    return %arg0, %arg1, %c0_i32 : i32, i32, i32
  }
}

</mosaic_0001>

<llo_original>
// kernel: match_assignment.3
$region0: #{match_assignment.3}
  #allocation0 [shape = 'u32[]', space=smem, size = 0x4, offset = 0x4, fixed_abs, tag = 'smem constant byte address 0x4 - core index']
  #allocation1 [shape = 'u32[144,128]{1,0:T(1,128)}', space=vmem, size = 0x12000, scoped, tag = 'internal scratch']
  #allocation2 [shape = 'f32[1,1]{1,0:T(1,128)S(1)}', space=vmem, size = 0x200, scoped, tag = 'scoped memory for match_assignment.3']
  %s0 = inlined_call_operand.vmem [shape: f32[2,8,32], index: 0, kind: input, shape index: {}]
  %s1 = inlined_call_operand.vmem [shape: bf16[32,32], index: 1, kind: input, shape index: {}]
  %s2 = inlined_call_operand.vmem [shape: f32[1,32], index: 2, kind: input, shape index: {}]
  %s3 = inlined_call_operand.vmem [shape: f32[1,32], index: 3, kind: input, shape index: {}]
  %s4 = inlined_call_operand.<no memory space> [shape: f32[1,1], index: 4, kind: input, shape index: {}]
  %s5 = inlined_call_operand.vmem [shape: bf16[2,8,32], index: 5, kind: output, shape index: {0}]
  %s6 = inlined_call_operand.vmem [shape: f32[2,1,8], index: 6, kind: output, shape index: {1}]
  %7 = xla_tuple %s5, %s6
  %s8 = sld [smem:[#allocation0]]
  $region61: #{match_assignment.3} parent=0
    _
  %s10 = ssub.s32 1, %s8
  %s11 = scalar_select 0, %s10, %s8
  %v12 = vstv %s4
  %13 = vst [vmem:[#allocation2] sm:$0x1] %v12
  loop: start=0, step=1, limit=4
  $region2: #{match_assignment.3} parent=0 // loop_pre_header
    _
  $region3: #{match_assignment.3} parent=0 // loop_header
    %s15 = sphi 0, %s19
    %p16 = scmp.ge.s32.totalorder %s15, 4
    %s25 = sphi 0, %s27
    %s28 = sphi 0, %s25
    %s29 = sphi 0, %s28
    %s45 = sphi 0, %s29
    %s49 = sphi 0, %s49
    %s51 = sphi 0, %s49
    %s52 = sphi 0, %s51
    %s66 = sphi 0, %s52
    %s70 = sphi 0, %s70
    %s72 = sphi 0, %s70
    %s73 = sphi 0, %s72
    %s87 = sphi 0, %s73
    %s91 = sphi 0, %s91
    %s93 = sphi 0, %s91
    %s94 = sphi 0, %s93
    %s108 = sphi 0, %s94
    %s112 = sphi 0, %s112
    %s114 = sphi 0, %s112
    %s115 = sphi 0, %s114
    %s129 = sphi 0, %s115
    %s135 = sphi 0, %s137
    %s138 = sphi 0, %s135
    %s139 = sphi 0, %s138
    %s155 = sphi 0, %s139
    %s161 = sphi 0, %s163
    %s164 = sphi 0, %s161
    %s165 = sphi 0, %s164
    %s181 = sphi 0, %s165
  $region4: #{match_assignment.3} parent=0 // loop_header_branch
    %18 = sbr.rel (%p16) target = $region8
  $region5: #{match_assignment.3} parent=0 // loop_body
    %s20 = ssub.s32 %s15, 1
    %s21 = ssub.s32 %s15, 2
    %s22 = sadd.s32 %s15, 1
    %s23 = ssub.s32 %s15, %s22
    %p24 = scmp.eq.s32.totalorder %s23, 0
    %s26 = sadd.s32 %s25, 1
    %s27 = scalar_select %p24, %s25, %s26
    %p30 = pneg %p24
    %p31 = scmp.eq.s32.totalorder %s15, 1
    %p32 = por %p30, %p31
    %p33 = scmp.ne.s32.totalorder %s25, %s28
    %p34 = scmp.eq.s32.totalorder %s15, 0
    %p35 = por %p33, %p34
    %p36 = scmp.ne.s32.totalorder %s25, %s28
    %p37 = scmp.eq.s32.totalorder %s20, 1
    %p38 = por %p36, %p37
    %p39 = scmp.ne.s32.totalorder %s28, %s29
    %p40 = scmp.eq.s32.totalorder %s20, 0
    %p41 = por %p39, %p40
    %p42 = scmp.ne.s32.totalorder %s28, %s29
    %p43 = scmp.eq.s32.totalorder %s21, 1
    %p44 = por %p42, %p43
    %p46 = scmp.ne.s32.totalorder %s29, %s45
    %p47 = scmp.eq.s32.totalorder %s21, 0
    %p48 = por %p46, %p47
    %s50 = sadd.s32 %s49, 1
    %p53 = scmp.eq.s32.totalorder %s15, 1
    %p54 = scmp.ne.s32.totalorder %s49, %s51
    %p55 = scmp.eq.s32.totalorder %s15, 0
    %p56 = por %p54, %p55
    %p57 = scmp.ne.s32.totalorder %s49, %s51
    %p58 = scmp.eq.s32.totalorder %s20, 1
    %p59 = por %p57, %p58
    %p60 = scmp.ne.s32.totalorder %s51, %s52
    %p61 = scmp.eq.s32.totalorder %s20, 0
    %p62 = por %p60, %p61
    %p63 = scmp.ne.s32.totalorder %s51, %s52
    %p64 = scmp.eq.s32.totalorder %s21, 1
    %p65 = por %p63, %p64
    %p67 = scmp.ne.s32.totalorder %s52, %s66
    %p68 = scmp.eq.s32.totalorder %s21, 0
    %p69 = por %p67, %p68
    %s71 = sadd.s32 %s70, 1
    %p74 = scmp.eq.s32.totalorder %s15, 1
    %p75 = scmp.ne.s32.totalorder %s70, %s72
    %p76 = scmp.eq.s32.totalorder %s15, 0
    %p77 = por %p75, %p76
    %p78 = scmp.ne.s32.totalorder %s70, %s72
    %p79 = scmp.eq.s32.totalorder %s20, 1
    %p80 = por %p78, %p79
    %p81 = scmp.ne.s32.totalorder %s72, %s73
    %p82 = scmp.eq.s32.totalorder %s20, 0
    %p83 = por %p81, %p82
    %p84 = scmp.ne.s32.totalorder %s72, %s73
    %p85 = scmp.eq.s32.totalorder %s21, 1
    %p86 = por %p84, %p85
    %p88 = scmp.ne.s32.totalorder %s73, %s87
    %p89 = scmp.eq.s32.totalorder %s21, 0
    %p90 = por %p88, %p89
    %s92 = sadd.s32 %s91, 1
    %p95 = scmp.eq.s32.totalorder %s15, 1
    %p96 = scmp.ne.s32.totalorder %s91, %s93
    %p97 = scmp.eq.s32.totalorder %s15, 0
    %p98 = por %p96, %p97
    %p99 = scmp.ne.s32.totalorder %s91, %s93
    %p100 = scmp.eq.s32.totalorder %s20, 1
    %p101 = por %p99, %p100
    %p102 = scmp.ne.s32.totalorder %s93, %s94
    %p103 = scmp.eq.s32.totalorder %s20, 0
    %p104 = por %p102, %p103
    %p105 = scmp.ne.s32.totalorder %s93, %s94
    %p106 = scmp.eq.s32.totalorder %s21, 1
    %p107 = por %p105, %p106
    %p109 = scmp.ne.s32.totalorder %s94, %s108
    %p110 = scmp.eq.s32.totalorder %s21, 0
    %p111 = por %p109, %p110
    %s113 = sadd.s32 %s112, 1
    %p116 = scmp.eq.s32.totalorder %s15, 1
    %p117 = scmp.ne.s32.totalorder %s112, %s114
    %p118 = scmp.eq.s32.totalorder %s15, 0
    %p119 = por %p117, %p118
    %p120 = scmp.ne.s32.totalorder %s112, %s114
    %p121 = scmp.eq.s32.totalorder %s20, 1
    %p122 = por %p120, %p121
    %p123 = scmp.ne.s32.totalorder %s114, %s115
    %p124 = scmp.eq.s32.totalorder %s20, 0
    %p125 = por %p123, %p124
    %p126 = scmp.ne.s32.totalorder %s114, %s115
    %p127 = scmp.eq.s32.totalorder %s21, 1
    %p128 = por %p126, %p127
    %p130 = scmp.ne.s32.totalorder %s115, %s129
    %p131 = scmp.eq.s32.totalorder %s21, 0
    %p132 = por %p130, %p131
    %s133 = ssub.s32 %s15, %s22
    %p134 = scmp.eq.s32.totalorder %s133, 0
    %s136 = sadd.s32 %s135, 1
    %s137 = scalar_select %p134, %s135, %s136
    %p140 = pneg %p134
    %p141 = scmp.eq.s32.totalorder %s15, 1
    %p142 = por %p140, %p141
    %p143 = scmp.ne.s32.totalorder %s135, %s138
    %p144 = scmp.eq.s32.totalorder %s15, 0
    %p145 = por %p143, %p144
    %p146 = scmp.ne.s32.totalorder %s135, %s138
    %p147 = scmp.eq.s32.totalorder %s20, 1
    %p148 = por %p146, %p147
    %p149 = scmp.ne.s32.totalorder %s138, %s139
    %p150 = scmp.eq.s32.totalorder %s20, 0
    %p151 = por %p149, %p150
    %p152 = scmp.ne.s32.totalorder %s138, %s139
    %p153 = scmp.eq.s32.totalorder %s21, 1
    %p154 = por %p152, %p153
    %p156 = scmp.ne.s32.totalorder %s139, %s155
    %p157 = scmp.eq.s32.totalorder %s21, 0
    %p158 = por %p156, %p157
    %s159 = ssub.s32 %s15, %s22
    %p160 = scmp.eq.s32.totalorder %s159, 0
    %s162 = sadd.s32 %s161, 1
    %s163 = scalar_select %p160, %s161, %s162
    %p166 = pneg %p160
    %p167 = scmp.eq.s32.totalorder %s15, 1
    %p168 = por %p166, %p167
    %p169 = scmp.ne.s32.totalorder %s161, %s164
    %p170 = scmp.eq.s32.totalorder %s15, 0
    %p171 = por %p169, %p170
    %p172 = scmp.ne.s32.totalorder %s161, %s164
    %p173 = scmp.eq.s32.totalorder %s20, 1
    %p174 = por %p172, %p173
    %p175 = scmp.ne.s32.totalorder %s164, %s165
    %p176 = scmp.eq.s32.totalorder %s20, 0
    %p177 = por %p175, %p176
    %p178 = scmp.ne.s32.totalorder %s164, %s165
    %p179 = scmp.eq.s32.totalorder %s21, 1
    %p180 = por %p178, %p179
    %p182 = scmp.ne.s32.totalorder %s165, %s181
    %p183 = scmp.eq.s32.totalorder %s21, 0
    %p184 = por %p182, %p183
    %p185 = scmp.le.s32.totalorder 1, %s15
    %p186 = scmp.lt.s32.totalorder %s15, 3
    %p187 = pnand %p185, %p186
    %p188 = pneg %p187
    // Predicated region
    $region9: #{match_assignment.3} parent=5 // pred_check
      _
    $region10: #{match_assignment.3} parent=5 // pred_check_branch
      %190 = sbr.rel (%p187) target = $region12
    $region11: #{match_assignment.3} parent=5 // pred_region
      %s191 = ssub.s32 %s15, 1
      // Predicated region
      $region13: #{match_assignment.3} parent=11 // pred_check
        %p192 = pneg %p62
      $region14: #{match_assignment.3} parent=11 // pred_check_branch
        %194 = sbr.rel (%p192) target = $region16
      $region15: #{match_assignment.3} parent=11 // pred_region
        _
      $region16: #{match_assignment.3} parent=11 // pred_fallthru
        _
      // Predicated region
      $region17: #{match_assignment.3} parent=11 // pred_check
        %p195 = pneg %p83
      $region18: #{match_assignment.3} parent=11 // pred_check_branch
        %197 = sbr.rel (%p195) target = $region20
      $region19: #{match_assignment.3} parent=11 // pred_region
        _
      $region20: #{match_assignment.3} parent=11 // pred_fallthru
        _
      // Predicated region
      $region21: #{match_assignment.3} parent=11 // pred_check
        %p198 = pneg %p104
      $region22: #{match_assignment.3} parent=11 // pred_check_branch
        %200 = sbr.rel (%p198) target = $region24
      $region23: #{match_assignment.3} parent=11 // pred_region
        _
      $region24: #{match_assignment.3} parent=11 // pred_fallthru
        _
      // Predicated region
      $region25: #{match_assignment.3} parent=11 // pred_check
        %p201 = pneg %p125
      $region26: #{match_assignment.3} parent=11 // pred_check_branch
        %203 = sbr.rel (%p201) target = $region28
      $region27: #{match_assignment.3} parent=11 // pred_region
        _
      $region28: #{match_assignment.3} parent=11 // pred_fallthru
        _
    $region12: #{match_assignment.3} parent=5 // pred_fallthru
      _
    %p204 = scmp.lt.s32.totalorder %s15, 2
    // Predicated region
    $region29: #{match_assignment.3} parent=5 // pred_check
      %p205 = pneg %p204
    $region30: #{match_assignment.3} parent=5 // pred_check_branch
      %207 = sbr.rel (%p205) target = $region32
    $region31: #{match_assignment.3} parent=5 // pred_region
      // Predicated region
      $region33: #{match_assignment.3} parent=31 // pred_check
        %p208 = pneg %p35
      $region34: #{match_assignment.3} parent=31 // pred_check_branch
        %210 = sbr.rel (%p208) target = $region36
      $region35: #{match_assignment.3} parent=31 // pred_region
        %p211 = scmp.lt.s32.totalorder %s15, 1
        %s212 = scalar_select %p211, %s15, 1
        %s213 = smul.addr %s212, 8
        %s214 = scalar_lea.vmem %s0, %s213
      $region36: #{match_assignment.3} parent=31 // pred_fallthru
        _
    $region32: #{match_assignment.3} parent=5 // pred_fallthru
      _
    %p215 = scmp.le.s32.totalorder 1, %s15
    %p216 = scmp.lt.s32.totalorder %s15, 3
    %p217 = pnand %p215, %p216
    %p218 = pneg %p217
    // Predicated region
    $region37: #{match_assignment.3} parent=5 // pred_check
      _
    $region38: #{match_assignment.3} parent=5 // pred_check_branch
      %220 = sbr.rel (%p217) target = $region40
    $region39: #{match_assignment.3} parent=5 // pred_region
      %s221 = ssub.s32 %s15, 1
      %p222 = scmp.lt.s32.totalorder %s20, 1
      %s223 = scalar_select %p222, %s20, 1
      %s224 = smul.addr %s223, 8
      %s225 = scalar_lea.vmem %s0, %s224
      %p226 = pneg %p41
      %p227 = pneg %p38
      %p228 = pneg %p62
      %p229 = pneg %p59
      %p230 = pneg %p83
      %p231 = pneg %p80
      %p232 = pneg %p104
      %p233 = pneg %p101
      %p234 = pneg %p125
      %p235 = pneg %p122
      %p236 = pneg %p151
      %p237 = pneg %p148
      %p238 = scmp.lt.s32.totalorder %s20, 1
      %s239 = scalar_select %p238, %s20, 1
      %s240 = smul.addr %s239, 4
      %s241 = scalar_lea.vmem %s5, %s240
      %p242 = pneg %p177
      %p243 = pneg %p174
      %p244 = scmp.lt.s32.totalorder %s20, 1
      %s245 = scalar_select %p244, %s20, 1
      %s246 = scalar_lea.vmem %s6, %s245
      %p247 = scmp.lt.s32.totalorder %s20, 1
      %s248 = scalar_select %p247, %s20, 1
      %s249 = smul.addr %s248, 8
      %s250 = scalar_lea.vmem %s0, %s249
      %p251 = scmp.lt.s32.totalorder %s20, 1
      %s252 = scalar_select %p251, %s20, 1
      %s253 = smul.addr %s252, 4
      %s254 = scalar_lea.vmem %s5, %s253
      %p255 = scmp.lt.s32.totalorder %s20, 1
      %s256 = scalar_select %p255, %s20, 1
      %s257 = scalar_lea.vmem %s6, %s256
      %v259 = vld [vmem:[%s250] sm:$0xff]
      %v260 = vld [vmem:[%s1] sm:$0xf]
      %v261 = vld [vmem:[%s1 + $0x4] sm:$0xf]
      %v262 = vld [vmem:[%s1 + $0x8] sm:$0xf]
      %v263 = vld [vmem:[%s1 + $0xc] sm:$0xf]
      %v264 = vld [vmem:[%s2] sm:$0x1]
      %v265 = vld [vmem:[%s3] sm:$0x1]
      %v266 = vld [vmem:[#allocation2] sm:$0x1]
      %v267 = vpack.c.bf16 %v259, %v259
      %v269 = vlaneseq
      %v270 = vshrl.u32 %v269, 7
      %v271 = vsub.s32 0, %v270
      %v272 = vrot.slane %v264, %v271
      %v278 = vunpack.c.l.b16 %v260
      %v279 = vunpack.c.l.b16 %v261
      %v280 = vunpack.c.l.b16 %v262
      %v281 = vunpack.c.l.b16 %v263
      %v282 = vpack.c.b16 %v279, %v278
      %v283 = vpack.c.b16 %v281, %v280
      %vm286 = vcmask 261120
      %v288 = vsel %vm286, %v267, 0
      %290 = vmatprep.subr.bf16.mxu0 0
      %291 = vmatpush1.bf16.msra.mxu0 %v282
      %292 = vmatprep.subr.bf16.mxu0 0
      %293 = vmatpush1.bf16.msra.mxu0 %v283
      %294 = vmatprep.subr.bf16.mxu0 0
      %295 = vmatpush1.bf16.msra.mxu0 0
      %296 = vmatprep.subr.bf16.mxu0 0
      %297 = vmatpush1.bf16.msra.mxu0 0
      %298 = vmatprep.subr.bf16.mxu0 0
      %299 = vmatpush1.bf16.msra.mxu0 0
      %300 = vmatprep.subr.bf16.mxu0 0
      %301 = vmatpush1.bf16.msra.mxu0 0
      %302 = vmatprep.subr.bf16.mxu0 0
      %303 = vmatpush1.bf16.msra.mxu0 0
      %304 = vmatprep.subr.bf16.mxu0 0
      %305 = vmatpush1.bf16.msra.mxu0 0
      %306 = vmatprep.subr.bf16.mxu0 0
      %307 = vmatpush1.bf16.msra.mxu0 0
      %308 = vmatprep.subr.bf16.mxu0 0
      %309 = vmatpush1.bf16.msra.mxu0 0
      %310 = vmatprep.subr.bf16.mxu0 0
      %311 = vmatpush1.bf16.msra.mxu0 0
      %312 = vmatprep.subr.bf16.mxu0 0
      %313 = vmatpush1.bf16.msra.mxu0 0
      %314 = vmatprep.subr.bf16.mxu0 0
      %315 = vmatpush1.bf16.msra.mxu0 0
      %316 = vmatprep.subr.bf16.mxu0 0
      %317 = vmatpush1.bf16.msra.mxu0 0
      %318 = vmatprep.subr.bf16.mxu0 0
      %319 = vmatpush1.bf16.msra.mxu0 0
      %320 = vmatprep.subr.bf16.mxu0 0
      %321 = vmatpush1.bf16.msra.mxu0 0
      %322 = vmatprep.mubr.bf16.mxu0 0
      %323 = vmatmul.mubr.bf16.gmra.mrb[0].mxu0 %v288
      %v324 = vpop.f32.mrb[0].mxu0
      %v325 = vadd.f32 %v272, %v324
      %v326 = vpop.f32.mrb[0].mxu0
      %v327 = vpop.f32.mrb[0].mxu0
      %v328 = vpop.f32.mrb[0].mxu0
      %329 = vdwg.mxu0
      %v330 = vpack.c.bf16 %v325, %v325
      %vm331 = vcmask 257024
      %332 = vst.msk [vmem:[%s254] sm:$0xf] %vm331, %v330
      %334 = vset.pattern.permute.xlu0 0
      %335 = vperm.xlu0 %334, %v266
      %v336 = vpop.permute.xlu0 %335
      %v338 = vlaneseq
      %v339 = vshrl.u32 %v338, 7
      %v340 = vsub.s32 0, %v339
      %v341 = vrot.slane %v336, %v340
      %v343 = vsel %vm286, %v265, 0
      %v346 = vsel %vm286, %v259, 0
      %348 = vmatprep.subr.mxu0 0.0
      %349 = vmatpush1.xpose.msra.mxu0 %v346
      %350 = vmatprep.subr.mxu0 0.0
      %351 = vmatpush1.xpose.msra.mxu0 0.0
      %352 = vmatprep.subr.mxu0 0.0
      %353 = vmatpush1.xpose.msra.mxu0 0.0
      %354 = vmatprep.subr.mxu0 0.0
      %355 = vmatpush1.xpose.msra.mxu0 0.0
      %356 = vmatprep.subr.mxu0 0.0
      %357 = vmatpush1.xpose.msra.mxu0 0.0
      %358 = vmatprep.subr.mxu0 0.0
      %359 = vmatpush1.xpose.msra.mxu0 0.0
      %360 = vmatprep.subr.mxu0 0.0
      %361 = vmatpush1.xpose.msra.mxu0 0.0
      %362 = vmatprep.subr.mxu0 0.0
      %363 = vmatpush1.xpose.msra.mxu0 0.0
      %364 = vmatprep.subr.mxu0 0.0
      %365 = vmatpush1.xpose.msra.mxu0 0.0
      %366 = vmatprep.subr.mxu0 0.0
      %367 = vmatpush1.xpose.msra.mxu0 0.0
      %368 = vmatprep.subr.mxu0 0.0
      %369 = vmatpush1.xpose.msra.mxu0 0.0
      %370 = vmatprep.subr.mxu0 0.0
      %371 = vmatpush1.xpose.msra.mxu0 0.0
      %372 = vmatprep.subr.mxu0 0.0
      %373 = vmatpush1.xpose.msra.mxu0 0.0
      %374 = vmatprep.subr.mxu0 0.0
      %375 = vmatpush1.xpose.msra.mxu0 0.0
      %376 = vmatprep.subr.mxu0 0.0
      %377 = vmatpush1.xpose.msra.mxu0 0.0
      %378 = vmatprep.subr.mxu0 0.0
      %379 = vmatpush1.xpose.msra.mxu0 0.0
      %380 = vmatprep.subr.mxu0 0.0
      %381 = vmatpush1.xpose.msra.mxu0 0.0
      %382 = vmatprep.subr.mxu0 0.0
      %383 = vmatpush1.xpose.msra.mxu0 0.0
      %384 = vmatprep.subr.mxu0 0.0
      %385 = vmatpush1.xpose.msra.mxu0 0.0
      %386 = vmatprep.subr.mxu0 0.0
      %387 = vmatpush1.xpose.msra.mxu0 0.0
      %388 = vmatprep.subr.mxu0 0.0
      %389 = vmatpush1.xpose.msra.mxu0 0.0
      %390 = vmatprep.subr.mxu0 0.0
      %391 = vmatpush1.xpose.msra.mxu0 0.0
      %392 = vmatprep.subr.mxu0 0.0
      %393 = vmatpush1.xpose.msra.mxu0 0.0
      %394 = vmatprep.subr.mxu0 0.0
      %395 = vmatpush1.xpose.msra.mxu0 0.0
      %396 = vmatprep.subr.mxu0 0.0
      %397 = vmatpush1.xpose.msra.mxu0 0.0
      %398 = vmatprep.subr.mxu0 0.0
      %399 = vmatpush1.xpose.msra.mxu0 0.0
      %400 = vmatprep.subr.mxu0 0.0
      %401 = vmatpush1.xpose.msra.mxu0 0.0
      %402 = vmatprep.subr.mxu0 0.0
      %403 = vmatpush1.xpose.msra.mxu0 0.0
      %404 = vmatprep.subr.mxu0 0.0
      %405 = vmatpush1.xpose.msra.mxu0 0.0
      %406 = vmatprep.subr.mxu0 0.0
      %407 = vmatpush1.xpose.msra.mxu0 0.0
      %408 = vmatprep.subr.mxu0 0.0
      %409 = vmatpush1.xpose.msra.mxu0 0.0
      %410 = vmatprep.subr.mxu0 0.0
      %411 = vmatpush1.xpose.msra.mxu0 0.0
      %412 = vmatprep.mubr.f32.mxu0 0.0
      %413 = vmatmul.mubr.f32.gmra.mrb[0].mxu0 %v343
      %v414 = vpop.f32.mrb[0].mxu0
      %v415 = vadd.f32 %v341, %v414
      %v416 = vpop.f32.mrb[0].mxu0
      %417 = vdwg.mxu0
      %vm418 = vcmask 57344
      %419 = vst.msk [vmem:[%s257] sm:$0x1] %vm418, %v415
      %p420 = scmp.lt.s32.totalorder %s20, 1
      %s421 = scalar_select %p420, %s20, 1
      %s422 = smul.addr %s421, 4
      %s423 = scalar_lea.vmem %s5, %s422
      %p424 = scmp.lt.s32.totalorder %s20, 1
      %s425 = scalar_select %p424, %s20, 1
      %s426 = scalar_lea.vmem %s6, %s425
      // Predicated region
      $region41: #{match_assignment.3} parent=39 // pred_check
        %p427 = pneg %p148
      $region42: #{match_assignment.3} parent=39 // pred_check_branch
        %429 = sbr.rel (%p427) target = $region44
      $region43: #{match_assignment.3} parent=39 // pred_region
        _
      $region44: #{match_assignment.3} parent=39 // pred_fallthru
        _
      // Predicated region
      $region45: #{match_assignment.3} parent=39 // pred_check
        %p430 = pneg %p174
      $region46: #{match_assignment.3} parent=39 // pred_check_branch
        %432 = sbr.rel (%p430) target = $region48
      $region47: #{match_assignment.3} parent=39 // pred_region
        _
      $region48: #{match_assignment.3} parent=39 // pred_fallthru
        _
    $region40: #{match_assignment.3} parent=5 // pred_fallthru
      _
    %p433 = scmp.le.s32.totalorder 2, %s15
    // Predicated region
    $region49: #{match_assignment.3} parent=5 // pred_check
      %p434 = pneg %p433
    $region50: #{match_assignment.3} parent=5 // pred_check_branch
      %436 = sbr.rel (%p434) target = $region52
    $region51: #{match_assignment.3} parent=5 // pred_region
      %s437 = ssub.s32 %s15, 2
      // Predicated region
      $region53: #{match_assignment.3} parent=51 // pred_check
        %p438 = pneg %p154
      $region54: #{match_assignment.3} parent=51 // pred_check_branch
        %440 = sbr.rel (%p438) target = $region56
      $region55: #{match_assignment.3} parent=51 // pred_region
        %p441 = scmp.lt.s32.totalorder %s21, 1
        %s442 = scalar_select %p441, %s21, 1
        %s443 = smul.addr %s442, 4
        %s444 = scalar_lea.vmem %s5, %s443
      $region56: #{match_assignment.3} parent=51 // pred_fallthru
        _
      // Predicated region
      $region57: #{match_assignment.3} parent=51 // pred_check
        %p445 = pneg %p180
      $region58: #{match_assignment.3} parent=51 // pred_check_branch
        %447 = sbr.rel (%p445) target = $region60
      $region59: #{match_assignment.3} parent=51 // pred_region
        %p448 = scmp.lt.s32.totalorder %s21, 1
        %s449 = scalar_select %p448, %s21, 1
        %s450 = scalar_lea.vmem %s6, %s449
      $region60: #{match_assignment.3} parent=51 // pred_fallthru
        _
    $region52: #{match_assignment.3} parent=5 // pred_fallthru
      _
  $region6: #{match_assignment.3} parent=0 // loop_footer
    %s19 = sadd.s32 1, %s15
  $region7: #{match_assignment.3} parent=0 // loop_footer_branch
    %14 = sbr.rel target = $region3
  $region8: #{match_assignment.3} parent=0 // loop_exit
    _

// kernel: match_assignment.5
$region0: #{match_assignment.5}
  #allocation0 [shape = 'u32[]', space=smem, size = 0x4, offset = 0x4, fixed_abs, tag = 'smem constant byte address 0x4 - core index']
  #allocation1 [shape = 'u32[144,128]{1,0:T(1,128)}', space=vmem, size = 0x12000, scoped, tag = 'internal scratch']
  %s0 = inlined_call_operand.vmem [shape: bf16[2,16,8], index: 0, kind: input, shape index: {}]
  %s1 = inlined_call_operand.vmem [shape: f32[2,1,8], index: 1, kind: input, shape index: {}]
  %s2 = inlined_call_operand.vmem [shape: f32[2,16,1], index: 2, kind: input, shape index: {}]
  %s3 = inlined_call_operand.vmem [shape: f32[2,1,8], index: 3, kind: input, shape index: {}]
  %s4 = inlined_call_operand.vmem [shape: f32[2,16,8], index: 4, kind: output, shape index: {}]
  %s5 = sld [smem:[#allocation0]]
  $region49: #{match_assignment.5} parent=0
    _
  %s7 = ssub.s32 1, %s5
  %s8 = scalar_select 0, %s7, %s5
  loop: start=0, step=1, limit=4
  $region2: #{match_assignment.5} parent=0 // loop_pre_header
    _
  $region3: #{match_assignment.5} parent=0 // loop_header
    %s10 = sphi 0, %s14
    %p11 = scmp.ge.s32.totalorder %s10, 4
    %s17 = sphi 0, %s29
    %s18 = sphi 0, %s25
    %s19 = sphi 0, %s17
    %s20 = sphi 0, %s18
    %s21 = sphi 0, %s19
    %s22 = sphi 0, %s20
    %s34 = sphi 0, %s36
    %s37 = sphi 0, %s34
    %s38 = sphi 0, %s37
    %s54 = sphi 0, %s38
    %s60 = sphi 0, %s62
    %s63 = sphi 0, %s60
    %s64 = sphi 0, %s63
    %s80 = sphi 0, %s64
    %s88 = sphi 0, %s90
    %s91 = sphi 0, %s88
    %s92 = sphi 0, %s91
    %s108 = sphi 0, %s92
    %s114 = sphi 0, %s116
    %s117 = sphi 0, %s114
    %s118 = sphi 0, %s117
    %s134 = sphi 0, %s118
    %s142 = sphi 0, %s144
    %s145 = sphi 0, %s142
    %s146 = sphi 0, %s145
    %s162 = sphi 0, %s146
  $region4: #{match_assignment.5} parent=0 // loop_header_branch
    %13 = sbr.rel (%p11) target = $region8
  $region5: #{match_assignment.5} parent=0 // loop_body
    %s15 = ssub.s32 %s10, 1
    %s16 = ssub.s32 %s10, 2
    %s23 = sadd.s32 1, %s18
    %p24 = scmp.ge.s32.totalorder %s23, 1
    %s25 = scalar_select %p24, 0, %s23
    %s26 = sadd.s32 1, %s17
    %s27 = scalar_select %p24, %s26, %s17
    %p28 = scmp.ge.s32.totalorder %s27, 2
    %s29 = scalar_select %p28, 0, %s27
    %s30 = ssub.s32 %s17, %s29
    %s31 = ssub.s32 %s18, %s25
    %s32 = sor.u32 %s30, %s31
    %p33 = scmp.eq.s32.totalorder %s32, 0
    %s35 = sadd.s32 %s34, 1
    %s36 = scalar_select %p33, %s34, %s35
    %p39 = pneg %p33
    %p40 = scmp.eq.s32.totalorder %s10, 1
    %p41 = por %p39, %p40
    %p42 = scmp.ne.s32.totalorder %s34, %s37
    %p43 = scmp.eq.s32.totalorder %s10, 0
    %p44 = por %p42, %p43
    %p45 = scmp.ne.s32.totalorder %s34, %s37
    %p46 = scmp.eq.s32.totalorder %s15, 1
    %p47 = por %p45, %p46
    %p48 = scmp.ne.s32.totalorder %s37, %s38
    %p49 = scmp.eq.s32.totalorder %s15, 0
    %p50 = por %p48, %p49
    %p51 = scmp.ne.s32.totalorder %s37, %s38
    %p52 = scmp.eq.s32.totalorder %s16, 1
    %p53 = por %p51, %p52
    %p55 = scmp.ne.s32.totalorder %s38, %s54
    %p56 = scmp.eq.s32.totalorder %s16, 0
    %p57 = por %p55, %p56
    %s58 = ssub.s32 %s17, %s29
    %p59 = scmp.eq.s32.totalorder %s58, 0
    %s61 = sadd.s32 %s60, 1
    %s62 = scalar_select %p59, %s60, %s61
    %p65 = pneg %p59
    %p66 = scmp.eq.s32.totalorder %s10, 1
    %p67 = por %p65, %p66
    %p68 = scmp.ne.s32.totalorder %s60, %s63
    %p69 = scmp.eq.s32.totalorder %s10, 0
    %p70 = por %p68, %p69
    %p71 = scmp.ne.s32.totalorder %s60, %s63
    %p72 = scmp.eq.s32.totalorder %s15, 1
    %p73 = por %p71, %p72
    %p74 = scmp.ne.s32.totalorder %s63, %s64
    %p75 = scmp.eq.s32.totalorder %s15, 0
    %p76 = por %p74, %p75
    %p77 = scmp.ne.s32.totalorder %s63, %s64
    %p78 = scmp.eq.s32.totalorder %s16, 1
    %p79 = por %p77, %p78
    %p81 = scmp.ne.s32.totalorder %s64, %s80
    %p82 = scmp.eq.s32.totalorder %s16, 0
    %p83 = por %p81, %p82
    %s84 = ssub.s32 %s17, %s29
    %s85 = ssub.s32 %s18, %s25
    %s86 = sor.u32 %s84, %s85
    %p87 = scmp.eq.s32.totalorder %s86, 0
    %s89 = sadd.s32 %s88, 1
    %s90 = scalar_select %p87, %s88, %s89
    %p93 = pneg %p87
    %p94 = scmp.eq.s32.totalorder %s10, 1
    %p95 = por %p93, %p94
    %p96 = scmp.ne.s32.totalorder %s88, %s91
    %p97 = scmp.eq.s32.totalorder %s10, 0
    %p98 = por %p96, %p97
    %p99 = scmp.ne.s32.totalorder %s88, %s91
    %p100 = scmp.eq.s32.totalorder %s15, 1
    %p101 = por %p99, %p100
    %p102 = scmp.ne.s32.totalorder %s91, %s92
    %p103 = scmp.eq.s32.totalorder %s15, 0
    %p104 = por %p102, %p103
    %p105 = scmp.ne.s32.totalorder %s91, %s92
    %p106 = scmp.eq.s32.totalorder %s16, 1
    %p107 = por %p105, %p106
    %p109 = scmp.ne.s32.totalorder %s92, %s108
    %p110 = scmp.eq.s32.totalorder %s16, 0
    %p111 = por %p109, %p110
    %s112 = ssub.s32 %s17, %s29
    %p113 = scmp.eq.s32.totalorder %s112, 0
    %s115 = sadd.s32 %s114, 1
    %s116 = scalar_select %p113, %s114, %s115
    %p119 = pneg %p113
    %p120 = scmp.eq.s32.totalorder %s10, 1
    %p121 = por %p119, %p120
    %p122 = scmp.ne.s32.totalorder %s114, %s117
    %p123 = scmp.eq.s32.totalorder %s10, 0
    %p124 = por %p122, %p123
    %p125 = scmp.ne.s32.totalorder %s114, %s117
    %p126 = scmp.eq.s32.totalorder %s15, 1
    %p127 = por %p125, %p126
    %p128 = scmp.ne.s32.totalorder %s117, %s118
    %p129 = scmp.eq.s32.totalorder %s15, 0
    %p130 = por %p128, %p129
    %p131 = scmp.ne.s32.totalorder %s117, %s118
    %p132 = scmp.eq.s32.totalorder %s16, 1
    %p133 = por %p131, %p132
    %p135 = scmp.ne.s32.totalorder %s118, %s134
    %p136 = scmp.eq.s32.totalorder %s16, 0
    %p137 = por %p135, %p136
    %s138 = ssub.s32 %s17, %s29
    %s139 = ssub.s32 %s18, %s25
    %s140 = sor.u32 %s138, %s139
    %p141 = scmp.eq.s32.totalorder %s140, 0
    %s143 = sadd.s32 %s142, 1
    %s144 = scalar_select %p141, %s142, %s143
    %p147 = pneg %p141
    %p148 = scmp.eq.s32.totalorder %s10, 1
    %p149 = por %p147, %p148
    %p150 = scmp.ne.s32.totalorder %s142, %s145
    %p151 = scmp.eq.s32.totalorder %s10, 0
    %p152 = por %p150, %p151
    %p153 = scmp.ne.s32.totalorder %s142, %s145
    %p154 = scmp.eq.s32.totalorder %s15, 1
    %p155 = por %p153, %p154
    %p156 = scmp.ne.s32.totalorder %s145, %s146
    %p157 = scmp.eq.s32.totalorder %s15, 0
    %p158 = por %p156, %p157
    %p159 = scmp.ne.s32.totalorder %s145, %s146
    %p160 = scmp.eq.s32.totalorder %s16, 1
    %p161 = por %p159, %p160
    %p163 = scmp.ne.s32.totalorder %s146, %s162
    %p164 = scmp.eq.s32.totalorder %s16, 0
    %p165 = por %p163, %p164
    %p166 = scmp.le.s32.totalorder 1, %s10
    %p167 = scmp.lt.s32.totalorder %s10, 3
    %p168 = pnand %p166, %p167
    %p169 = pneg %p168
    // Predicated region
    $region9: #{match_assignment.5} parent=5 // pred_check
      _
    $region10: #{match_assignment.5} parent=5 // pred_check_branch
      %171 = sbr.rel (%p168) target = $region12
    $region11: #{match_assignment.5} parent=5 // pred_region
      %s172 = ssub.s32 %s10, 1
    $region12: #{match_assignment.5} parent=5 // pred_fallthru
      _
    %p173 = scmp.lt.s32.totalorder %s10, 2
    // Predicated region
    $region13: #{match_assignment.5} parent=5 // pred_check
      %p174 = pneg %p173
    $region14: #{match_assignment.5} parent=5 // pred_check_branch
      %176 = sbr.rel (%p174) target = $region16
    $region15: #{match_assignment.5} parent=5 // pred_region
      // Predicated region
      $region17: #{match_assignment.5} parent=15 // pred_check
        %p177 = pneg %p44
      $region18: #{match_assignment.5} parent=15 // pred_check_branch
        %179 = sbr.rel (%p177) target = $region20
      $region19: #{match_assignment.5} parent=15 // pred_region
        %s180 = smul.u32 2, %s18
        %p181 = scmp.lt.s32.totalorder %s17, 1
        %s182 = scalar_select %p181, %s17, 1
        %p183 = scmp.lt.s32.totalorder %s180, 1
        %s184 = scalar_select %p183, %s180, 1
        %s185 = smul.addr %s182, 2
        %s186 = sadd.s32 %s184, %s185
        %s187 = smul.addr %s186, 4
        %s188 = scalar_lea.vmem %s0, %s187
        %s189 = smul.u32 2, %s18
      $region20: #{match_assignment.5} parent=15 // pred_fallthru
        _
      // Predicated region
      $region21: #{match_assignment.5} parent=15 // pred_check
        %p190 = pneg %p70
      $region22: #{match_assignment.5} parent=15 // pred_check_branch
        %192 = sbr.rel (%p190) target = $region24
      $region23: #{match_assignment.5} parent=15 // pred_region
        %p193 = scmp.lt.s32.totalorder %s17, 1
        %s194 = scalar_select %p193, %s17, 1
        %s195 = scalar_lea.vmem %s1, %s194
      $region24: #{match_assignment.5} parent=15 // pred_fallthru
        _
      // Predicated region
      $region25: #{match_assignment.5} parent=15 // pred_check
        %p196 = pneg %p98
      $region26: #{match_assignment.5} parent=15 // pred_check_branch
        %198 = sbr.rel (%p196) target = $region28
      $region27: #{match_assignment.5} parent=15 // pred_region
        %s199 = smul.u32 2, %s18
        %p200 = scmp.lt.s32.totalorder %s17, 1
        %s201 = scalar_select %p200, %s17, 1
        %p202 = scmp.lt.s32.totalorder %s199, 1
        %s203 = scalar_select %p202, %s199, 1
        %s204 = smul.addr %s201, 2
        %s205 = sadd.s32 %s203, %s204
        %s206 = smul.addr %s205, 8
        %s207 = scalar_lea.vmem %s2, %s206
        %s208 = smul.u32 2, %s18
      $region28: #{match_assignment.5} parent=15 // pred_fallthru
        _
      // Predicated region
      $region29: #{match_assignment.5} parent=15 // pred_check
        %p209 = pneg %p124
      $region30: #{match_assignment.5} parent=15 // pred_check_branch
        %211 = sbr.rel (%p209) target = $region32
      $region31: #{match_assignment.5} parent=15 // pred_region
        %p212 = scmp.lt.s32.totalorder %s17, 1
        %s213 = scalar_select %p212, %s17, 1
        %s214 = scalar_lea.vmem %s3, %s213
      $region32: #{match_assignment.5} parent=15 // pred_fallthru
        _
    $region16: #{match_assignment.5} parent=5 // pred_fallthru
      _
    %p215 = scmp.le.s32.totalorder 1, %s10
    %p216 = scmp.lt.s32.totalorder %s10, 3
    %p217 = pnand %p215, %p216
    %p218 = pneg %p217
    // Predicated region
    $region33: #{match_assignment.5} parent=5 // pred_check
      _
    $region34: #{match_assignment.5} parent=5 // pred_check_branch
      %220 = sbr.rel (%p217) target = $region36
    $region35: #{match_assignment.5} parent=5 // pred_region
      %s221 = ssub.s32 %s10, 1
      %s222 = smul.u32 2, %s20
      %p223 = scmp.lt.s32.totalorder %s19, 1
      %s224 = scalar_select %p223, %s19, 1
      %p225 = scmp.lt.s32.totalorder %s222, 1
      %s226 = scalar_select %p225, %s222, 1
      %s227 = smul.addr %s224, 2
      %s228 = sadd.s32 %s226, %s227
      %s229 = smul.addr %s228, 4
      %s230 = scalar_lea.vmem %s0, %s229
      %p231 = pneg %p50
      %p232 = pneg %p47
      %p233 = scmp.lt.s32.totalorder %s19, 1
      %s234 = scalar_select %p233, %s19, 1
      %s235 = scalar_lea.vmem %s1, %s234
      %p236 = pneg %p76
      %p237 = pneg %p73
      %s238 = smul.u32 2, %s20
      %p239 = scmp.lt.s32.totalorder %s19, 1
      %s240 = scalar_select %p239, %s19, 1
      %p241 = scmp.lt.s32.totalorder %s238, 1
      %s242 = scalar_select %p241, %s238, 1
      %s243 = smul.addr %s240, 2
      %s244 = sadd.s32 %s242, %s243
      %s245 = smul.addr %s244, 8
      %s246 = scalar_lea.vmem %s2, %s245
      %p247 = pneg %p104
      %p248 = pneg %p101
      %p249 = scmp.lt.s32.totalorder %s19, 1
      %s250 = scalar_select %p249, %s19, 1
      %s251 = scalar_lea.vmem %s3, %s250
      %p252 = pneg %p130
      %p253 = pneg %p127
      %p254 = pneg %p158
      %p255 = pneg %p155
      %s256 = smul.u32 2, %s20
      %p257 = scmp.lt.s32.totalorder %s19, 1
      %s258 = scalar_select %p257, %s19, 1
      %p259 = scmp.lt.s32.totalorder %s256, 1
      %s260 = scalar_select %p259, %s256, 1
      %s261 = smul.addr %s258, 2
      %s262 = sadd.s32 %s260, %s261
      %s263 = smul.addr %s262, 8
      %s264 = scalar_lea.vmem %s4, %s263
      %s265 = smul.u32 2, %s20
      %p266 = scmp.lt.s32.totalorder %s19, 1
      %s267 = scalar_select %p266, %s19, 1
      %p268 = scmp.lt.s32.totalorder %s265, 1
      %s269 = scalar_select %p268, %s265, 1
      %s270 = smul.addr %s267, 2
      %s271 = sadd.s32 %s269, %s270
      %s272 = smul.addr %s271, 4
      %s273 = scalar_lea.vmem %s0, %s272
      %s274 = smul.u32 2, %s20
      %p275 = scmp.lt.s32.totalorder %s19, 1
      %s276 = scalar_select %p275, %s19, 1
      %s277 = scalar_lea.vmem %s1, %s276
      %s278 = smul.u32 2, %s20
      %p279 = scmp.lt.s32.totalorder %s19, 1
      %s280 = scalar_select %p279, %s19, 1
      %p281 = scmp.lt.s32.totalorder %s278, 1
      %s282 = scalar_select %p281, %s278, 1
      %s283 = smul.addr %s280, 2
      %s284 = sadd.s32 %s282, %s283
      %s285 = smul.addr %s284, 8
      %s286 = scalar_lea.vmem %s2, %s285
      %s287 = smul.u32 2, %s20
      %p288 = scmp.lt.s32.totalorder %s19, 1
      %s289 = scalar_select %p288, %s19, 1
      %s290 = scalar_lea.vmem %s3, %s289
      %s291 = smul.u32 2, %s20
      %p292 = scmp.lt.s32.totalorder %s19, 1
      %s293 = scalar_select %p292, %s19, 1
      %p294 = scmp.lt.s32.totalorder %s291, 1
      %s295 = scalar_select %p294, %s291, 1
      %s296 = smul.addr %s293, 2
      %s297 = sadd.s32 %s295, %s296
      %s298 = smul.addr %s297, 8
      %s299 = scalar_lea.vmem %s4, %s298
      %s300 = smul.u32 2, %s20
      %v301 = vld [vmem:[%s273] sm:$0xf]
      %v302 = vld [vmem:[%s273 + $0x4] sm:$0xf]
      %v303 = vunpack.c.l.bf16 %v301
      %v304 = vunpack.c.l.bf16 %v302
      %v305 = vld [vmem:[%s277] sm:$0x1]
      %v306 = vld [vmem:[%s286] sm:$0xff]
      %v307 = vld [vmem:[%s286 + $0x8] sm:$0xff]
      %v308 = vld [vmem:[%s290] sm:$0x1]
      %vm309 = vcmask 64512
      %v310 = vsel %vm309, %v303, -inf
      %311 = vmax.xlane.f32.xlu0 %v310
      %v312 = vpop.xlane.xlu0 %311
      %v313 = vsel %vm309, %v304, -inf
      %314 = vmax.xlane.f32.xlu0 %v313
      %v315 = vpop.xlane.xlu0 %314
      %v316 = vsub.f32 %v303, %v312
      %v317 = vsub.f32 %v304, %v315
      %v318 = vmul.f32 %v316, 1.442695
      %v319 = vpow.pop %v318
      %v320 = vmul.f32 %v317, 1.442695
      %v321 = vpow.pop %v320
      %v322 = vsel %vm309, %v319, 0.0
      %323 = vadd.xlane.f32.xlu0 %v322
      %v324 = vpop.xlane.xlu0 %323
      %v325 = vsel %vm309, %v321, 0.0
      %326 = vadd.xlane.f32.xlu0 %v325
      %v327 = vpop.xlane.xlu0 %326
      %v328 = vlog2.pop %v324
      %v329 = vmul.f32 %v328, 0.6931472
      %v330 = vlog2.pop %v327
      %v331 = vmul.f32 %v330, 0.6931472
      %v332 = vadd.f32 %v312, %v329
      %v333 = vadd.f32 %v315, %v331
      %v334 = vmin.f32 %v306, 0.0
      %v335 = vmin.f32 %v307, 0.0
      %v336 = vand.u32 2147483647, %v306
      %v337 = vand.u32 2147483647, %v307
      %v338 = vsub.f32 0.0, %v336
      %v339 = vsub.f32 0.0, %v337
      %v340 = vmul.f32 %v338, 1.442695
      %v341 = vpow.pop %v340
      %v342 = vmul.f32 %v339, 1.442695
      %v343 = vpow.pop %v342
      %v344 = vadd.f32 %v341, 1.0
      %v345 = vlog2.pop %v344
      %v346 = vmul.f32 %v345, 0.6931472
      %v347 = vmul.f32 -0.5, %v341
      %v348 = vadd.f32 %v347, 1.0
      %v349 = vmul.f32 %v348, %v341
      %v350 = vand.u32 2147483647, %v341
      %vm351 = vcmp.lt.f32.partialorder %v350, 0.0004427343
      %v352 = vsel %vm351, %v349, %v346
      %v353 = vadd.f32 %v343, 1.0
      %v354 = vlog2.pop %v353
      %v355 = vmul.f32 %v354, 0.6931472
      %v356 = vmul.f32 -0.5, %v343
      %v357 = vadd.f32 %v356, 1.0
      %v358 = vmul.f32 %v357, %v343
      %v359 = vand.u32 2147483647, %v343
      %vm360 = vcmp.lt.f32.partialorder %v359, 0.0004427343
      %v361 = vsel %vm360, %v358, %v355
      %v362 = vsub.f32 %v334, %v352
      %v363 = vsub.f32 %v335, %v361
      %365 = vset.pattern.permute.xlu0 0
      %366 = vperm.xlu0 %365, %v362
      %v367 = vpop.permute.xlu0 %366
      %370 = vset.pattern.permute.xlu0 0
      %371 = vperm.xlu0 %370, %v363
      %v372 = vpop.permute.xlu0 %371
      %v375 = vlaneseq
      %v376 = vshrl.u32 %v375, 7
      %v377 = vsub.s32 0, %v376
      %v378 = vrot.slane %v308, %v377
      %v380 = vadd.f32 %v367, %v378
      %v381 = vadd.f32 %v372, %v378
      %v382 = vmul.f32 %v303, 2.0
      %v383 = vmul.f32 %v304, 2.0
      %v384 = vsub.f32 %v382, %v332
      %v385 = vsub.f32 %v383, %v333
      %v387 = vlaneseq
      %v388 = vshrl.u32 %v387, 7
      %v389 = vsub.s32 0, %v388
      %v390 = vrot.slane %v305, %v389
      %v392 = vsub.f32 %v384, %v390
      %v393 = vsub.f32 %v385, %v390
      %v394 = vadd.f32 %v392, %v380
      %v395 = vadd.f32 %v393, %v381
      %396 = vst.msk [vmem:[%s299] sm:$0xff] %vm309, %v394
      %397 = vst.msk [vmem:[%s299 + $0x8] sm:$0xff] %vm309, %v395
      %s398 = smul.u32 2, %s20
      %p399 = scmp.lt.s32.totalorder %s19, 1
      %s400 = scalar_select %p399, %s19, 1
      %p401 = scmp.lt.s32.totalorder %s398, 1
      %s402 = scalar_select %p401, %s398, 1
      %s403 = smul.addr %s400, 2
      %s404 = sadd.s32 %s402, %s403
      %s405 = smul.addr %s404, 8
      %s406 = scalar_lea.vmem %s4, %s405
      // Predicated region
      $region37: #{match_assignment.5} parent=35 // pred_check
        %p407 = pneg %p155
      $region38: #{match_assignment.5} parent=35 // pred_check_branch
        %409 = sbr.rel (%p407) target = $region40
      $region39: #{match_assignment.5} parent=35 // pred_region
        %s410 = smul.u32 2, %s20
      $region40: #{match_assignment.5} parent=35 // pred_fallthru
        _
    $region36: #{match_assignment.5} parent=5 // pred_fallthru
      _
    %p411 = scmp.le.s32.totalorder 2, %s10
    // Predicated region
    $region41: #{match_assignment.5} parent=5 // pred_check
      %p412 = pneg %p411
    $region42: #{match_assignment.5} parent=5 // pred_check_branch
      %414 = sbr.rel (%p412) target = $region44
    $region43: #{match_assignment.5} parent=5 // pred_region
      %s415 = ssub.s32 %s10, 2
      // Predicated region
      $region45: #{match_assignment.5} parent=43 // pred_check
        %p416 = pneg %p161
      $region46: #{match_assignment.5} parent=43 // pred_check_branch
        %418 = sbr.rel (%p416) target = $region48
      $region47: #{match_assignment.5} parent=43 // pred_region
        %s419 = smul.u32 2, %s22
        %p420 = scmp.lt.s32.totalorder %s21, 1
        %s421 = scalar_select %p420, %s21, 1
        %p422 = scmp.lt.s32.totalorder %s419, 1
        %s423 = scalar_select %p422, %s419, 1
        %s424 = smul.addr %s421, 2
        %s425 = sadd.s32 %s423, %s424
        %s426 = smul.addr %s425, 8
        %s427 = scalar_lea.vmem %s4, %s426
      $region48: #{match_assignment.5} parent=43 // pred_fallthru
        _
    $region44: #{match_assignment.5} parent=5 // pred_fallthru
      _
  $region6: #{match_assignment.5} parent=0 // loop_footer
    %s14 = sadd.s32 1, %s10
  $region7: #{match_assignment.5} parent=0 // loop_footer_branch
    %9 = sbr.rel target = $region3
  $region8: #{match_assignment.5} parent=0 // loop_exit
    _

// kernel: match_assignment.4
$region0: #{match_assignment.4}
  #allocation0 [shape = 'u32[]', space=smem, size = 0x4, offset = 0x4, fixed_abs, tag = 'smem constant byte address 0x4 - core index']
  #allocation1 [shape = 'u32[144,128]{1,0:T(1,128)}', space=vmem, size = 0x12000, scoped, tag = 'internal scratch']
  #allocation2 [shape = 'f32[1,1]{1,0:T(1,128)S(1)}', space=vmem, size = 0x200, scoped, tag = 'scoped memory for match_assignment.4']
  %s0 = inlined_call_operand.vmem [shape: f32[2,16,32], index: 0, kind: input, shape index: {}]
  %s1 = inlined_call_operand.vmem [shape: bf16[2,8,32], index: 1, kind: input, shape index: {}]
  %s2 = inlined_call_operand.vmem [shape: bf16[32,32], index: 2, kind: input, shape index: {}]
  %s3 = inlined_call_operand.vmem [shape: f32[1,32], index: 3, kind: input, shape index: {}]
  %s4 = inlined_call_operand.vmem [shape: f32[1,32], index: 4, kind: input, shape index: {}]
  %s5 = inlined_call_operand.<no memory space> [shape: f32[1,1], index: 5, kind: input, shape index: {}]
  %s6 = inlined_call_operand.vmem [shape: bf16[2,16,8], index: 6, kind: output, shape index: {0}]
  %s7 = inlined_call_operand.vmem [shape: f32[2,1,8], index: 7, kind: output, shape index: {1}]
  %s8 = inlined_call_operand.vmem [shape: f32[2,16,1], index: 8, kind: output, shape index: {2}]
  %9 = xla_tuple %s6, %s7, %s8
  %s10 = sld [smem:[#allocation0]]
  $region73: #{match_assignment.4} parent=0
    _
  %s12 = ssub.s32 1, %s10
  %s13 = scalar_select 0, %s12, %s10
  %v14 = vstv %s5
  %15 = vst [vmem:[#allocation2] sm:$0x1] %v14
  loop: start=0, step=1, limit=4
  $region2: #{match_assignment.4} parent=0 // loop_pre_header
    _
  $region3: #{match_assignment.4} parent=0 // loop_header
    %s17 = sphi 0, %s21
    %p18 = scmp.ge.s32.totalorder %s17, 4
    %s24 = sphi 0, %s36
    %s25 = sphi 0, %s32
    %s26 = sphi 0, %s24
    %s27 = sphi 0, %s25
    %s28 = sphi 0, %s26
    %s29 = sphi 0, %s27
    %s41 = sphi 0, %s43
    %s44 = sphi 0, %s41
    %s45 = sphi 0, %s44
    %s61 = sphi 0, %s45
    %s67 = sphi 0, %s69
    %s70 = sphi 0, %s67
    %s71 = sphi 0, %s70
    %s87 = sphi 0, %s71
    %s91 = sphi 0, %s91
    %s93 = sphi 0, %s91
    %s94 = sphi 0, %s93
    %s108 = sphi 0, %s94
    %s112 = sphi 0, %s112
    %s114 = sphi 0, %s112
    %s115 = sphi 0, %s114
    %s129 = sphi 0, %s115
    %s133 = sphi 0, %s133
    %s135 = sphi 0, %s133
    %s136 = sphi 0, %s135
    %s150 = sphi 0, %s136
    %s154 = sphi 0, %s154
    %s156 = sphi 0, %s154
    %s157 = sphi 0, %s156
    %s171 = sphi 0, %s157
    %s179 = sphi 0, %s181
    %s182 = sphi 0, %s179
    %s183 = sphi 0, %s182
    %s199 = sphi 0, %s183
    %s207 = sphi 0, %s209
    %s210 = sphi 0, %s207
    %s211 = sphi 0, %s210
    %s227 = sphi 0, %s211
    %s235 = sphi 0, %s237
    %s238 = sphi 0, %s235
    %s239 = sphi 0, %s238
    %s255 = sphi 0, %s239
  $region4: #{match_assignment.4} parent=0 // loop_header_branch
    %20 = sbr.rel (%p18) target = $region8
  $region5: #{match_assignment.4} parent=0 // loop_body
    %s22 = ssub.s32 %s17, 1
    %s23 = ssub.s32 %s17, 2
    %s30 = sadd.s32 1, %s25
    %p31 = scmp.ge.s32.totalorder %s30, 1
    %s32 = scalar_select %p31, 0, %s30
    %s33 = sadd.s32 1, %s24
    %s34 = scalar_select %p31, %s33, %s24
    %p35 = scmp.ge.s32.totalorder %s34, 2
    %s36 = scalar_select %p35, 0, %s34
    %s37 = ssub.s32 %s24, %s36
    %s38 = ssub.s32 %s25, %s32
    %s39 = sor.u32 %s37, %s38
    %p40 = scmp.eq.s32.totalorder %s39, 0
    %s42 = sadd.s32 %s41, 1
    %s43 = scalar_select %p40, %s41, %s42
    %p46 = pneg %p40
    %p47 = scmp.eq.s32.totalorder %s17, 1
    %p48 = por %p46, %p47
    %p49 = scmp.ne.s32.totalorder %s41, %s44
    %p50 = scmp.eq.s32.totalorder %s17, 0
    %p51 = por %p49, %p50
    %p52 = scmp.ne.s32.totalorder %s41, %s44
    %p53 = scmp.eq.s32.totalorder %s22, 1
    %p54 = por %p52, %p53
    %p55 = scmp.ne.s32.totalorder %s44, %s45
    %p56 = scmp.eq.s32.totalorder %s22, 0
    %p57 = por %p55, %p56
    %p58 = scmp.ne.s32.totalorder %s44, %s45
    %p59 = scmp.eq.s32.totalorder %s23, 1
    %p60 = por %p58, %p59
    %p62 = scmp.ne.s32.totalorder %s45, %s61
    %p63 = scmp.eq.s32.totalorder %s23, 0
    %p64 = por %p62, %p63
    %s65 = ssub.s32 %s24, %s36
    %p66 = scmp.eq.s32.totalorder %s65, 0
    %s68 = sadd.s32 %s67, 1
    %s69 = scalar_select %p66, %s67, %s68
    %p72 = pneg %p66
    %p73 = scmp.eq.s32.totalorder %s17, 1
    %p74 = por %p72, %p73
    %p75 = scmp.ne.s32.totalorder %s67, %s70
    %p76 = scmp.eq.s32.totalorder %s17, 0
    %p77 = por %p75, %p76
    %p78 = scmp.ne.s32.totalorder %s67, %s70
    %p79 = scmp.eq.s32.totalorder %s22, 1
    %p80 = por %p78, %p79
    %p81 = scmp.ne.s32.totalorder %s70, %s71
    %p82 = scmp.eq.s32.totalorder %s22, 0
    %p83 = por %p81, %p82
    %p84 = scmp.ne.s32.totalorder %s70, %s71
    %p85 = scmp.eq.s32.totalorder %s23, 1
    %p86 = por %p84, %p85
    %p88 = scmp.ne.s32.totalorder %s71, %s87
    %p89 = scmp.eq.s32.totalorder %s23, 0
    %p90 = por %p88, %p89
    %s92 = sadd.s32 %s91, 1
    %p95 = scmp.eq.s32.totalorder %s17, 1
    %p96 = scmp.ne.s32.totalorder %s91, %s93
    %p97 = scmp.eq.s32.totalorder %s17, 0
    %p98 = por %p96, %p97
    %p99 = scmp.ne.s32.totalorder %s91, %s93
    %p100 = scmp.eq.s32.totalorder %s22, 1
    %p101 = por %p99, %p100
    %p102 = scmp.ne.s32.totalorder %s93, %s94
    %p103 = scmp.eq.s32.totalorder %s22, 0
    %p104 = por %p102, %p103
    %p105 = scmp.ne.s32.totalorder %s93, %s94
    %p106 = scmp.eq.s32.totalorder %s23, 1
    %p107 = por %p105, %p106
    %p109 = scmp.ne.s32.totalorder %s94, %s108
    %p110 = scmp.eq.s32.totalorder %s23, 0
    %p111 = por %p109, %p110
    %s113 = sadd.s32 %s112, 1
    %p116 = scmp.eq.s32.totalorder %s17, 1
    %p117 = scmp.ne.s32.totalorder %s112, %s114
    %p118 = scmp.eq.s32.totalorder %s17, 0
    %p119 = por %p117, %p118
    %p120 = scmp.ne.s32.totalorder %s112, %s114
    %p121 = scmp.eq.s32.totalorder %s22, 1
    %p122 = por %p120, %p121
    %p123 = scmp.ne.s32.totalorder %s114, %s115
    %p124 = scmp.eq.s32.totalorder %s22, 0
    %p125 = por %p123, %p124
    %p126 = scmp.ne.s32.totalorder %s114, %s115
    %p127 = scmp.eq.s32.totalorder %s23, 1
    %p128 = por %p126, %p127
    %p130 = scmp.ne.s32.totalorder %s115, %s129
    %p131 = scmp.eq.s32.totalorder %s23, 0
    %p132 = por %p130, %p131
    %s134 = sadd.s32 %s133, 1
    %p137 = scmp.eq.s32.totalorder %s17, 1
    %p138 = scmp.ne.s32.totalorder %s133, %s135
    %p139 = scmp.eq.s32.totalorder %s17, 0
    %p140 = por %p138, %p139
    %p141 = scmp.ne.s32.totalorder %s133, %s135
    %p142 = scmp.eq.s32.totalorder %s22, 1
    %p143 = por %p141, %p142
    %p144 = scmp.ne.s32.totalorder %s135, %s136
    %p145 = scmp.eq.s32.totalorder %s22, 0
    %p146 = por %p144, %p145
    %p147 = scmp.ne.s32.totalorder %s135, %s136
    %p148 = scmp.eq.s32.totalorder %s23, 1
    %p149 = por %p147, %p148
    %p151 = scmp.ne.s32.totalorder %s136, %s150
    %p152 = scmp.eq.s32.totalorder %s23, 0
    %p153 = por %p151, %p152
    %s155 = sadd.s32 %s154, 1
    %p158 = scmp.eq.s32.totalorder %s17, 1
    %p159 = scmp.ne.s32.totalorder %s154, %s156
    %p160 = scmp.eq.s32.totalorder %s17, 0
    %p161 = por %p159, %p160
    %p162 = scmp.ne.s32.totalorder %s154, %s156
    %p163 = scmp.eq.s32.totalorder %s22, 1
    %p164 = por %p162, %p163
    %p165 = scmp.ne.s32.totalorder %s156, %s157
    %p166 = scmp.eq.s32.totalorder %s22, 0
    %p167 = por %p165, %p166
    %p168 = scmp.ne.s32.totalorder %s156, %s157
    %p169 = scmp.eq.s32.totalorder %s23, 1
    %p170 = por %p168, %p169
    %p172 = scmp.ne.s32.totalorder %s157, %s171
    %p173 = scmp.eq.s32.totalorder %s23, 0
    %p174 = por %p172, %p173
    %s175 = ssub.s32 %s24, %s36
    %s176 = ssub.s32 %s25, %s32
    %s177 = sor.u32 %s175, %s176
    %p178 = scmp.eq.s32.totalorder %s177, 0
    %s180 = sadd.s32 %s179, 1
    %s181 = scalar_select %p178, %s179, %s180
    %p184 = pneg %p178
    %p185 = scmp.eq.s32.totalorder %s17, 1
    %p186 = por %p184, %p185
    %p187 = scmp.ne.s32.totalorder %s179, %s182
    %p188 = scmp.eq.s32.totalorder %s17, 0
    %p189 = por %p187, %p188
    %p190 = scmp.ne.s32.totalorder %s179, %s182
    %p191 = scmp.eq.s32.totalorder %s22, 1
    %p192 = por %p190, %p191
    %p193 = scmp.ne.s32.totalorder %s182, %s183
    %p194 = scmp.eq.s32.totalorder %s22, 0
    %p195 = por %p193, %p194
    %p196 = scmp.ne.s32.totalorder %s182, %s183
    %p197 = scmp.eq.s32.totalorder %s23, 1
    %p198 = por %p196, %p197
    %p200 = scmp.ne.s32.totalorder %s183, %s199
    %p201 = scmp.eq.s32.totalorder %s23, 0
    %p202 = por %p200, %p201
    %s203 = ssub.s32 %s24, %s36
    %s204 = ssub.s32 %s25, %s32
    %s205 = sor.u32 %s203, %s204
    %p206 = scmp.eq.s32.totalorder %s205, 0
    %s208 = sadd.s32 %s207, 1
    %s209 = scalar_select %p206, %s207, %s208
    %p212 = pneg %p206
    %p213 = scmp.eq.s32.totalorder %s17, 1
    %p214 = por %p212, %p213
    %p215 = scmp.ne.s32.totalorder %s207, %s210
    %p216 = scmp.eq.s32.totalorder %s17, 0
    %p217 = por %p215, %p216
    %p218 = scmp.ne.s32.totalorder %s207, %s210
    %p219 = scmp.eq.s32.totalorder %s22, 1
    %p220 = por %p218, %p219
    %p221 = scmp.ne.s32.totalorder %s210, %s211
    %p222 = scmp.eq.s32.totalorder %s22, 0
    %p223 = por %p221, %p222
    %p224 = scmp.ne.s32.totalorder %s210, %s211
    %p225 = scmp.eq.s32.totalorder %s23, 1
    %p226 = por %p224, %p225
    %p228 = scmp.ne.s32.totalorder %s211, %s227
    %p229 = scmp.eq.s32.totalorder %s23, 0
    %p230 = por %p228, %p229
    %s231 = ssub.s32 %s24, %s36
    %s232 = ssub.s32 %s25, %s32
    %s233 = sor.u32 %s231, %s232
    %p234 = scmp.eq.s32.totalorder %s233, 0
    %s236 = sadd.s32 %s235, 1
    %s237 = scalar_select %p234, %s235, %s236
    %p240 = pneg %p234
    %p241 = scmp.eq.s32.totalorder %s17, 1
    %p242 = por %p240, %p241
    %p243 = scmp.ne.s32.totalorder %s235, %s238
    %p244 = scmp.eq.s32.totalorder %s17, 0
    %p245 = por %p243, %p244
    %p246 = scmp.ne.s32.totalorder %s235, %s238
    %p247 = scmp.eq.s32.totalorder %s22, 1
    %p248 = por %p246, %p247
    %p249 = scmp.ne.s32.totalorder %s238, %s239
    %p250 = scmp.eq.s32.totalorder %s22, 0
    %p251 = por %p249, %p250
    %p252 = scmp.ne.s32.totalorder %s238, %s239
    %p253 = scmp.eq.s32.totalorder %s23, 1
    %p254 = por %p252, %p253
    %p256 = scmp.ne.s32.totalorder %s239, %s255
    %p257 = scmp.eq.s32.totalorder %s23, 0
    %p258 = por %p256, %p257
    %p259 = scmp.le.s32.totalorder 1, %s17
    %p260 = scmp.lt.s32.totalorder %s17, 3
    %p261 = pnand %p259, %p260
    %p262 = pneg %p261
    // Predicated region
    $region9: #{match_assignment.4} parent=5 // pred_check
      _
    $region10: #{match_assignment.4} parent=5 // pred_check_branch
      %264 = sbr.rel (%p261) target = $region12
    $region11: #{match_assignment.4} parent=5 // pred_region
      %s265 = ssub.s32 %s17, 1
      // Predicated region
      $region13: #{match_assignment.4} parent=11 // pred_check
        %p266 = pneg %p104
      $region14: #{match_assignment.4} parent=11 // pred_check_branch
        %268 = sbr.rel (%p266) target = $region16
      $region15: #{match_assignment.4} parent=11 // pred_region
        _
      $region16: #{match_assignment.4} parent=11 // pred_fallthru
        _
      // Predicated region
      $region17: #{match_assignment.4} parent=11 // pred_check
        %p269 = pneg %p125
      $region18: #{match_assignment.4} parent=11 // pred_check_branch
        %271 = sbr.rel (%p269) target = $region20
      $region19: #{match_assignment.4} parent=11 // pred_region
        _
      $region20: #{match_assignment.4} parent=11 // pred_fallthru
        _
      // Predicated region
      $region21: #{match_assignment.4} parent=11 // pred_check
        %p272 = pneg %p146
      $region22: #{match_assignment.4} parent=11 // pred_check_branch
        %274 = sbr.rel (%p272) target = $region24
      $region23: #{match_assignment.4} parent=11 // pred_region
        _
      $region24: #{match_assignment.4} parent=11 // pred_fallthru
        _
      // Predicated region
      $region25: #{match_assignment.4} parent=11 // pred_check
        %p275 = pneg %p167
      $region26: #{match_assignment.4} parent=11 // pred_check_branch
        %277 = sbr.rel (%p275) target = $region28
      $region27: #{match_assignment.4} parent=11 // pred_region
        _
      $region28: #{match_assignment.4} parent=11 // pred_fallthru
        _
    $region12: #{match_assignment.4} parent=5 // pred_fallthru
      _
    %p278 = scmp.lt.s32.totalorder %s17, 2
    // Predicated region
    $region29: #{match_assignment.4} parent=5 // pred_check
      %p279 = pneg %p278
    $region30: #{match_assignment.4} parent=5 // pred_check_branch
      %281 = sbr.rel (%p279) target = $region32
    $region31: #{match_assignment.4} parent=5 // pred_region
      // Predicated region
      $region33: #{match_assignment.4} parent=31 // pred_check
        %p282 = pneg %p51
      $region34: #{match_assignment.4} parent=31 // pred_check_branch
        %284 = sbr.rel (%p282) target = $region36
      $region35: #{match_assignment.4} parent=31 // pred_region
        %s285 = smul.u32 2, %s25
        %p286 = scmp.lt.s32.totalorder %s24, 1
        %s287 = scalar_select %p286, %s24, 1
        %p288 = scmp.lt.s32.totalorder %s285, 1
        %s289 = scalar_select %p288, %s285, 1
        %s290 = smul.addr %s287, 2
        %s291 = sadd.s32 %s289, %s290
        %s292 = smul.addr %s291, 8
        %s293 = scalar_lea.vmem %s0, %s292
        %s294 = smul.u32 2, %s25
      $region36: #{match_assignment.4} parent=31 // pred_fallthru
        _
      // Predicated region
      $region37: #{match_assignment.4} parent=31 // pred_check
        %p295 = pneg %p77
      $region38: #{match_assignment.4} parent=31 // pred_check_branch
        %297 = sbr.rel (%p295) target = $region40
      $region39: #{match_assignment.4} parent=31 // pred_region
        %p298 = scmp.lt.s32.totalorder %s24, 1
        %s299 = scalar_select %p298, %s24, 1
        %s300 = smul.addr %s299, 4
        %s301 = scalar_lea.vmem %s1, %s300
      $region40: #{match_assignment.4} parent=31 // pred_fallthru
        _
    $region32: #{match_assignment.4} parent=5 // pred_fallthru
      _
    %p302 = scmp.le.s32.totalorder 1, %s17
    %p303 = scmp.lt.s32.totalorder %s17, 3
    %p304 = pnand %p302, %p303
    %p305 = pneg %p304
    // Predicated region
    $region41: #{match_assignment.4} parent=5 // pred_check
      _
    $region42: #{match_assignment.4} parent=5 // pred_check_branch
      %307 = sbr.rel (%p304) target = $region44
    $region43: #{match_assignment.4} parent=5 // pred_region
      %s308 = ssub.s32 %s17, 1
      %s309 = smul.u32 2, %s27
      %p310 = scmp.lt.s32.totalorder %s26, 1
      %s311 = scalar_select %p310, %s26, 1
      %p312 = scmp.lt.s32.totalorder %s309, 1
      %s313 = scalar_select %p312, %s309, 1
      %s314 = smul.addr %s311, 2
      %s315 = sadd.s32 %s313, %s314
      %s316 = smul.addr %s315, 8
      %s317 = scalar_lea.vmem %s0, %s316
      %p318 = pneg %p57
      %p319 = pneg %p54
      %p320 = scmp.lt.s32.totalorder %s26, 1
      %s321 = scalar_select %p320, %s26, 1
      %s322 = smul.addr %s321, 4
      %s323 = scalar_lea.vmem %s1, %s322
      %p324 = pneg %p83
      %p325 = pneg %p80
      %p326 = pneg %p104
      %p327 = pneg %p101
      %p328 = pneg %p125
      %p329 = pneg %p122
      %p330 = pneg %p146
      %p331 = pneg %p143
      %p332 = pneg %p167
      %p333 = pneg %p164
      %p334 = pneg %p195
      %p335 = pneg %p192
      %s336 = smul.u32 2, %s27
      %p337 = scmp.lt.s32.totalorder %s26, 1
      %s338 = scalar_select %p337, %s26, 1
      %p339 = scmp.lt.s32.totalorder %s336, 1
      %s340 = scalar_select %p339, %s336, 1
      %s341 = smul.addr %s338, 2
      %s342 = sadd.s32 %s340, %s341
      %s343 = smul.addr %s342, 4
      %s344 = scalar_lea.vmem %s6, %s343
      %p345 = pneg %p223
      %p346 = pneg %p220
      %p347 = scmp.lt.s32.totalorder %s26, 1
      %s348 = scalar_select %p347, %s26, 1
      %p349 = scmp.lt.s32.totalorder %s27, 0
      %s350 = scalar_select %p349, %s27, 0
      %s351 = sadd.s32 %s350, %s348
      %s352 = scalar_lea.vmem %s7, %s351
      %p353 = pneg %p251
      %p354 = pneg %p248
      %s355 = smul.u32 2, %s27
      %p356 = scmp.lt.s32.totalorder %s26, 1
      %s357 = scalar_select %p356, %s26, 1
      %p358 = scmp.lt.s32.totalorder %s355, 1
      %s359 = scalar_select %p358, %s355, 1
      %s360 = smul.addr %s357, 2
      %s361 = sadd.s32 %s359, %s360
      %s362 = smul.addr %s361, 8
      %s363 = scalar_lea.vmem %s8, %s362
      %s364 = smul.u32 2, %s27
      %p365 = scmp.lt.s32.totalorder %s26, 1
      %s366 = scalar_select %p365, %s26, 1
      %p367 = scmp.lt.s32.totalorder %s364, 1
      %s368 = scalar_select %p367, %s364, 1
      %s369 = smul.addr %s366, 2
      %s370 = sadd.s32 %s368, %s369
      %s371 = smul.addr %s370, 8
      %s372 = scalar_lea.vmem %s0, %s371
      %s373 = smul.u32 2, %s27
      %p374 = scmp.lt.s32.totalorder %s26, 1
      %s375 = scalar_select %p374, %s26, 1
      %s376 = smul.addr %s375, 4
      %s377 = scalar_lea.vmem %s1, %s376
      %s378 = smul.u32 2, %s27
      %p379 = scmp.lt.s32.totalorder %s26, 1
      %s380 = scalar_select %p379, %s26, 1
      %p381 = scmp.lt.s32.totalorder %s378, 1
      %s382 = scalar_select %p381, %s378, 1
      %s383 = smul.addr %s380, 2
      %s384 = sadd.s32 %s382, %s383
      %s385 = smul.addr %s384, 4
      %s386 = scalar_lea.vmem %s6, %s385
      %s387 = smul.u32 2, %s27
      %p388 = scmp.lt.s32.totalorder %s26, 1
      %s389 = scalar_select %p388, %s26, 1
      %p390 = scmp.lt.s32.totalorder %s27, 0
      %s391 = scalar_select %p390, %s27, 0
      %s392 = sadd.s32 %s391, %s389
      %s393 = scalar_lea.vmem %s7, %s392
      %s394 = smul.u32 2, %s27
      %p395 = scmp.lt.s32.totalorder %s26, 1
      %s396 = scalar_select %p395, %s26, 1
      %p397 = scmp.lt.s32.totalorder %s394, 1
      %s398 = scalar_select %p397, %s394, 1
      %s399 = smul.addr %s396, 2
      %s400 = sadd.s32 %s398, %s399
      %s401 = smul.addr %s400, 8
      %s402 = scalar_lea.vmem %s8, %s401
      %s403 = smul.u32 2, %s27
      %v405 = vld [vmem:[%s372] sm:$0xff]
      %v406 = vld [vmem:[%s372 + $0x8] sm:$0xff]
      %v407 = vld [vmem:[%s377] sm:$0xf]
      %v408 = vld [vmem:[%s2] sm:$0xf]
      %v409 = vld [vmem:[%s2 + $0x4] sm:$0xf]
      %v410 = vld [vmem:[%s2 + $0x8] sm:$0xf]
      %v411 = vld [vmem:[%s2 + $0xc] sm:$0xf]
      %v412 = vld [vmem:[%s3] sm:$0x1]
      %v413 = vld [vmem:[%s4] sm:$0x1]
      %v414 = vld [vmem:[#allocation2] sm:$0x1]
      %v415 = vpack.c.bf16 %v406, %v405
      %v417 = vlaneseq
      %v418 = vshrl.u32 %v417, 7
      %v419 = vsub.s32 0, %v418
      %v420 = vrot.slane %v412, %v419
      %v426 = vunpack.c.l.b16 %v408
      %v427 = vunpack.c.l.b16 %v409
      %v428 = vunpack.c.l.b16 %v410
      %v429 = vunpack.c.l.b16 %v411
      %v430 = vpack.c.b16 %v427, %v426
      %v431 = vpack.c.b16 %v429, %v428
      %vm434 = vcmask 261120
      %v436 = vsel %vm434, %v415, 0
      %438 = vmatprep.subr.bf16.mxu0 0
      %439 = vmatpush1.bf16.msra.mxu0 %v430
      %440 = vmatprep.subr.bf16.mxu0 0
      %441 = vmatpush1.bf16.msra.mxu0 %v431
      %442 = vmatprep.subr.bf16.mxu0 0
      %443 = vmatpush1.bf16.msra.mxu0 0
      %444 = vmatprep.subr.bf16.mxu0 0
      %445 = vmatpush1.bf16.msra.mxu0 0
      %446 = vmatprep.subr.bf16.mxu0 0
      %447 = vmatpush1.bf16.msra.mxu0 0
      %448 = vmatprep.subr.bf16.mxu0 0
      %449 = vmatpush1.bf16.msra.mxu0 0
      %450 = vmatprep.subr.bf16.mxu0 0
      %451 = vmatpush1.bf16.msra.mxu0 0
      %452 = vmatprep.subr.bf16.mxu0 0
      %453 = vmatpush1.bf16.msra.mxu0 0
      %454 = vmatprep.subr.bf16.mxu0 0
      %455 = vmatpush1.bf16.msra.mxu0 0
      %456 = vmatprep.subr.bf16.mxu0 0
      %457 = vmatpush1.bf16.msra.mxu0 0
      %458 = vmatprep.subr.bf16.mxu0 0
      %459 = vmatpush1.bf16.msra.mxu0 0
      %460 = vmatprep.subr.bf16.mxu0 0
      %461 = vmatpush1.bf16.msra.mxu0 0
      %462 = vmatprep.subr.bf16.mxu0 0
      %463 = vmatpush1.bf16.msra.mxu0 0
      %464 = vmatprep.subr.bf16.mxu0 0
      %465 = vmatpush1.bf16.msra.mxu0 0
      %466 = vmatprep.subr.bf16.mxu0 0
      %467 = vmatpush1.bf16.msra.mxu0 0
      %468 = vmatprep.subr.bf16.mxu0 0
      %469 = vmatpush1.bf16.msra.mxu0 0
      %470 = vmatprep.mubr.bf16.mxu0 0
      %471 = vmatmul.mubr.bf16.gmra.mrb[0].mxu0 %v436
      %v472 = vpop.f32.mrb[0].mxu0
      %v473 = vadd.f32 %v420, %v472
      %v474 = vpop.f32.mrb[0].mxu0
      %v475 = vpop.f32.mrb[0].mxu0
      %v476 = vadd.f32 %v420, %v475
      %v477 = vpop.f32.mrb[0].mxu0
      %478 = vdwg.mxu0
      %v479 = vpack.c.bf16 %v476, %v473
      %v481 = vsel %vm434, %v479, 0
      %v484 = vsel %vm434, %v407, 0
      %486 = vmatprep.subr.bf16.mxu0 0
      %487 = vmatpush1.bf16.xpose.msra.mxu0 %v484
      %488 = vmatprep.subr.bf16.mxu0 0
      %489 = vmatpush1.bf16.xpose.msra.mxu0 0
      %490 = vmatprep.subr.bf16.mxu0 0
      %491 = vmatpush1.bf16.xpose.msra.mxu0 0
      %492 = vmatprep.subr.bf16.mxu0 0
      %493 = vmatpush1.bf16.xpose.msra.mxu0 0
      %494 = vmatprep.subr.bf16.mxu0 0
      %495 = vmatpush1.bf16.xpose.msra.mxu0 0
      %496 = vmatprep.subr.bf16.mxu0 0
      %497 = vmatpush1.bf16.xpose.msra.mxu0 0
      %498 = vmatprep.subr.bf16.mxu0 0
      %499 = vmatpush1.bf16.xpose.msra.mxu0 0
      %500 = vmatprep.subr.bf16.mxu0 0
      %501 = vmatpush1.bf16.xpose.msra.mxu0 0
      %502 = vmatprep.subr.bf16.mxu0 0
      %503 = vmatpush1.bf16.xpose.msra.mxu0 0
      %504 = vmatprep.subr.bf16.mxu0 0
      %505 = vmatpush1.bf16.xpose.msra.mxu0 0
      %506 = vmatprep.subr.bf16.mxu0 0
      %507 = vmatpush1.bf16.xpose.msra.mxu0 0
      %508 = vmatprep.subr.bf16.mxu0 0
      %509 = vmatpush1.bf16.xpose.msra.mxu0 0
      %510 = vmatprep.subr.bf16.mxu0 0
      %511 = vmatpush1.bf16.xpose.msra.mxu0 0
      %512 = vmatprep.subr.bf16.mxu0 0
      %513 = vmatpush1.bf16.xpose.msra.mxu0 0
      %514 = vmatprep.subr.bf16.mxu0 0
      %515 = vmatpush1.bf16.xpose.msra.mxu0 0
      %516 = vmatprep.subr.bf16.mxu0 0
      %517 = vmatpush1.bf16.xpose.msra.mxu0 0
      %518 = vmatprep.mubr.bf16.mxu0 0
      %519 = vmatmul.mubr.bf16.gmra.mrb[0].mxu0 %v481
      %v520 = vpop.f32.mrb[0].mxu0
      %v521 = vadd.f32 0.0, %v520
      %v522 = vpop.f32.mrb[0].mxu0
      %v523 = vpop.f32.mrb[0].mxu0
      %v524 = vadd.f32 0.0, %v523
      %v525 = vpop.f32.mrb[0].mxu0
      %526 = vdwg.mxu0
      %v527 = vpack.c.bf16 %v524, %v521
      %v529 = vunpack.c.l.b16 %v527
      %v530 = vunpack.c.h.b16 %v527
      %v531 = vpack.c.b16 %v529, %v529
      %v532 = vpack.c.b16 %v530, %v530
      %vm535 = vcmask 60416
      %536 = vst.msk [vmem:[%s386] sm:$0xf] %vm535, %v531
      %537 = vst.msk [vmem:[%s386 + $0x4] sm:$0xf] %vm535, %v532
      %vm538 = vcmask 64512
      %v539 = vsel %vm538, %v521, -inf
      %v540 = vsel %vm538, %v524, -inf
      %v541 = vmax.f32 %v539, %v540
      %v542 = vrot.slane %v541, 4
      %v543 = vmax.f32 %v541, %v542
      %v544 = vrot.slane %v543, 2
      %v545 = vmax.f32 %v543, %v544
      %v546 = vrot.slane %v545, 1
      %v547 = vmax.f32 %v545, %v546
      %v548 = vsub.f32 %v521, %v547
      %v549 = vsub.f32 %v524, %v547
      %v550 = vmul.f32 %v548, 1.442695
      %v551 = vpow.pop %v550
      %v552 = vmul.f32 %v549, 1.442695
      %v553 = vpow.pop %v552
      %v554 = vsel %vm538, %v551, 0.0
      %v555 = vsel %vm538, %v553, 0.0
      %v556 = vadd.f32 %v554, %v555
      %v557 = vrot.slane %v556, 4
      %v558 = vadd.f32 %v556, %v557
      %v559 = vrot.slane %v558, 2
      %v560 = vadd.f32 %v558, %v559
      %v561 = vrot.slane %v560, 1
      %v562 = vadd.f32 %v560, %v561
      %v563 = vlog2.pop %v562
      %v564 = vmul.f32 %v563, 0.6931472
      %v565 = vadd.f32 %v547, %v564
      %vm566 = vcmask 57344
      %567 = vst.msk [vmem:[%s393] sm:$0x1] %vm566, %v565
      %v569 = vlaneseq
      %v570 = vshrl.u32 %v569, 7
      %v571 = vsub.s32 0, %v570
      %v572 = vrot.slane %v413, %v571
      %v574 = vmul.f32 %v405, %v572
      %v575 = vmul.f32 %v406, %v572
      %v576 = vsel %vm434, %v574, 0.0
      %577 = vadd.xlane.f32.xlu0 %v576
      %v578 = vpop.xlane.xlu0 %577
      %v579 = vsel %vm434, %v575, 0.0
      %580 = vadd.xlane.f32.xlu0 %v579
      %v581 = vpop.xlane.xlu0 %580
      %v583 = vlaneseq
      %v584 = vshrl.u32 %v583, 7
      %v585 = vsub.s32 0, %v584
      %v586 = vrot.slane %v414, %v585
      %v588 = vadd.f32 %v578, %v586
      %v589 = vadd.f32 %v581, %v586
      %vm590 = vcmask 7168
      %591 = vst.msk [vmem:[%s402] sm:$0xff] %vm590, %v588
      %592 = vst.msk [vmem:[%s402 + $0x8] sm:$0xff] %vm590, %v589
      %s593 = smul.u32 2, %s27
      %p594 = scmp.lt.s32.totalorder %s26, 1
      %s595 = scalar_select %p594, %s26, 1
      %p596 = scmp.lt.s32.totalorder %s593, 1
      %s597 = scalar_select %p596, %s593, 1
      %s598 = smul.addr %s595, 2
      %s599 = sadd.s32 %s597, %s598
      %s600 = smul.addr %s599, 4
      %s601 = scalar_lea.vmem %s6, %s600
      %p602 = scmp.lt.s32.totalorder %s26, 1
      %s603 = scalar_select %p602, %s26, 1
      %p604 = scmp.lt.s32.totalorder %s27, 0
      %s605 = scalar_select %p604, %s27, 0
      %s606 = sadd.s32 %s605, %s603
      %s607 = scalar_lea.vmem %s7, %s606
      %s608 = smul.u32 2, %s27
      %p609 = scmp.lt.s32.totalorder %s26, 1
      %s610 = scalar_select %p609, %s26, 1
      %p611 = scmp.lt.s32.totalorder %s608, 1
      %s612 = scalar_select %p611, %s608, 1
      %s613 = smul.addr %s610, 2
      %s614 = sadd.s32 %s612, %s613
      %s615 = smul.addr %s614, 8
      %s616 = scalar_lea.vmem %s8, %s615
      // Predicated region
      $region45: #{match_assignment.4} parent=43 // pred_check
        %p617 = pneg %p192
      $region46: #{match_assignment.4} parent=43 // pred_check_branch
        %619 = sbr.rel (%p617) target = $region48
      $region47: #{match_assignment.4} parent=43 // pred_region
        %s620 = smul.u32 2, %s27
      $region48: #{match_assignment.4} parent=43 // pred_fallthru
        _
      // Predicated region
      $region49: #{match_assignment.4} parent=43 // pred_check
        %p621 = pneg %p220
      $region50: #{match_assignment.4} parent=43 // pred_check_branch
        %623 = sbr.rel (%p621) target = $region52
      $region51: #{match_assignment.4} parent=43 // pred_region
        _
      $region52: #{match_assignment.4} parent=43 // pred_fallthru
        _
      // Predicated region
      $region53: #{match_assignment.4} parent=43 // pred_check
        %p624 = pneg %p248
      $region54: #{match_assignment.4} parent=43 // pred_check_branch
        %626 = sbr.rel (%p624) target = $region56
      $region55: #{match_assignment.4} parent=43 // pred_region
        %s627 = smul.u32 2, %s27
      $region56: #{match_assignment.4} parent=43 // pred_fallthru
        _
    $region44: #{match_assignment.4} parent=5 // pred_fallthru
      _
    %p628 = scmp.le.s32.totalorder 2, %s17
    // Predicated region
    $region57: #{match_assignment.4} parent=5 // pred_check
      %p629 = pneg %p628
    $region58: #{match_assignment.4} parent=5 // pred_check_branch
      %631 = sbr.rel (%p629) target = $region60
    $region59: #{match_assignment.4} parent=5 // pred_region
      %s632 = ssub.s32 %s17, 2
      // Predicated region
      $region61: #{match_assignment.4} parent=59 // pred_check
        %p633 = pneg %p198
      $region62: #{match_assignment.4} parent=59 // pred_check_branch
        %635 = sbr.rel (%p633) target = $region64
      $region63: #{match_assignment.4} parent=59 // pred_region
        %s636 = smul.u32 2, %s29
        %p637 = scmp.lt.s32.totalorder %s28, 1
        %s638 = scalar_select %p637, %s28, 1
        %p639 = scmp.lt.s32.totalorder %s636, 1
        %s640 = scalar_select %p639, %s636, 1
        %s641 = smul.addr %s638, 2
        %s642 = sadd.s32 %s640, %s641
        %s643 = smul.addr %s642, 4
        %s644 = scalar_lea.vmem %s6, %s643
      $region64: #{match_assignment.4} parent=59 // pred_fallthru
        _
      // Predicated region
      $region65: #{match_assignment.4} parent=59 // pred_check
        %p645 = pneg %p226
      $region66: #{match_assignment.4} parent=59 // pred_check_branch
        %647 = sbr.rel (%p645) target = $region68
      $region67: #{match_assignment.4} parent=59 // pred_region
        %p648 = scmp.lt.s32.totalorder %s28, 1
        %s649 = scalar_select %p648, %s28, 1
        %p650 = scmp.lt.s32.totalorder %s29, 0
        %s651 = scalar_select %p650, %s29, 0
        %s652 = sadd.s32 %s651, %s649
        %s653 = scalar_lea.vmem %s7, %s652
      $region68: #{match_assignment.4} parent=59 // pred_fallthru
        _
      // Predicated region
      $region69: #{match_assignment.4} parent=59 // pred_check
        %p654 = pneg %p254
      $region70: #{match_assignment.4} parent=59 // pred_check_branch
        %656 = sbr.rel (%p654) target = $region72
      $region71: #{match_assignment.4} parent=59 // pred_region
        %s657 = smul.u32 2, %s29
        %p658 = scmp.lt.s32.totalorder %s28, 1
        %s659 = scalar_select %p658, %s28, 1
        %p660 = scmp.lt.s32.totalorder %s657, 1
        %s661 = scalar_select %p660, %s657, 1
        %s662 = smul.addr %s659, 2
        %s663 = sadd.s32 %s661, %s662
        %s664 = smul.addr %s663, 8
        %s665 = scalar_lea.vmem %s8, %s664
      $region72: #{match_assignment.4} parent=59 // pred_fallthru
        _
    $region60: #{match_assignment.4} parent=5 // pred_fallthru
      _
  $region6: #{match_assignment.4} parent=0 // loop_footer
    %s21 = sadd.s32 1, %s17
  $region7: #{match_assignment.4} parent=0 // loop_footer_branch
    %16 = sbr.rel target = $region3
  $region8: #{match_assignment.4} parent=0 // loop_exit
    _

</llo_original>
